<compile_context>
chip_gen: v7x
topology: tpu7x:2x2x1
jax: 0.10.0
libtpu: 0.0.40
codegen_flags: <defaults>
</compile_context>

<pallas_src>
import functools

import numpy as np
import jax
import jax.numpy as jnp
from jax import lax
from jax.experimental import pallas as pl
from jax.experimental.pallas import tpu as pltpu

EPS = 1e-5
PADR = 16  # halo rows for the bf16 intermediate scratch (sublane-tile aligned)


def _conv2d_same_block_kernel(x_ref, b1_ref, b2_ref, p1_ref, p2_ref,
                              g1_ref, be1_ref, g2_ref, be2_ref,
                              m1_ref, m2_ref, o_ref, mid_ref, *,
                              inv_count, relu):
    # x_ref  : (R+2, L1) bf16  zero-padded input rows, +1 halo row top/bottom
    #          (row = n*(H+2) + padded_h, lane = padded_w*Cin + ci)
    # b1_ref : (3, L1, L1) bf16 banded conv1 weights (one matrix per kernel row)
    # b2_ref : (3, L1, L2) bf16 banded conv2 weights
    # p1/p2  : (L1, L1) / (L2, L2) f32 per-channel sum->broadcast projectors
    # g*/be* : (1, L1) / (1, L2) f32 BN gamma/beta pre-broadcast to lane layout
    # m1/m2  : (R, L1) / (R, L2) f32 validity masks (real conv outputs only)
    # o_ref  : (R, L2) f32 lane-dense output rows (border rows dropped outside)
    # mid_ref: (R + 2*PADR, L1) bf16 scratch for the padded intermediate
    R, L2 = o_ref.shape
    L1 = x_ref.shape[1]

    mask1 = m1_ref[...]
    mask2 = m2_ref[...]

    # ---- Conv1: 3 lane-dense matmuls, horizontal taps + channels folded in K
    acc1 = jnp.zeros((R, L1), jnp.float32)
    for dy in range(3):
        acc1 = acc1 + jnp.dot(x_ref[dy:dy + R, :], b1_ref[dy],
                              preferred_element_type=jnp.float32)
    acc1 = acc1 * mask1  # zero halo rows/cols (not real conv outputs)

    # ---- BatchNorm1 folded into per-lane scale/shift (one-pass stats) + ReLU
    mean1 = jnp.dot(jnp.sum(acc1, axis=0, keepdims=True), p1_ref[...],
                    preferred_element_type=jnp.float32) * inv_count
    ex2_1 = jnp.dot(jnp.sum(acc1 * acc1, axis=0, keepdims=True), p1_ref[...],
                    preferred_element_type=jnp.float32) * inv_count
    s1 = g1_ref[...] * lax.rsqrt(ex2_1 - mean1 * mean1 + EPS)
    t1 = be1_ref[...] - mean1 * s1
    # masked result is already the zero-padded conv2 input (no re-padding pass)
    y1 = jnp.maximum(acc1 * s1 + t1, 0.0) * mask1

    # ---- stage intermediate; only the small halo row blocks get zeroed ------
    mid_ref[0:PADR, :] = jnp.zeros((PADR, L1), mid_ref.dtype)
    mid_ref[PADR + R:PADR + R + PADR, :] = jnp.zeros((PADR, L1), mid_ref.dtype)
    mid_ref[PADR:PADR + R, :] = y1.astype(mid_ref.dtype)

    # ---- Conv2: 3 lane-dense matmuls over the staged intermediate -----------
    acc2 = jnp.zeros((R, L2), jnp.float32)
    for dy in range(3):
        off = PADR - 1 + dy
        acc2 = acc2 + jnp.dot(mid_ref[off:off + R, :], b2_ref[dy],
                              preferred_element_type=jnp.float32)
    acc2 = acc2 * mask2

    # ---- BatchNorm2 (+ optional final ReLU) ---------------------------------
    mean2 = jnp.dot(jnp.sum(acc2, axis=0, keepdims=True), p2_ref[...],
                    preferred_element_type=jnp.float32) * inv_count
    ex2_2 = jnp.dot(jnp.sum(acc2 * acc2, axis=0, keepdims=True), p2_ref[...],
                    preferred_element_type=jnp.float32) * inv_count
    s2 = g2_ref[...] * lax.rsqrt(ex2_2 - mean2 * mean2 + EPS)
    t2 = be2_ref[...] - mean2 * s2
    y2 = acc2 * s2 + t2
    if relu:
        y2 = jnp.maximum(y2, 0.0)
    o_ref[...] = y2  # (R, W*Cout): lane-dense store


# ----------------------------- host-side helpers -----------------------------

def _banded_conv_weights(w_hwio, W, pad_out):
    """(3,3,Cin,Co) HWIO -> (3, (W+2)*Cin, Lout) banded matrices (one per ky)."""
    Cin, Co = int(w_hwio.shape[2]), int(w_hwio.shape[3])
    Wp = W + 2
    Lout = (Wp if pad_out else W) * Co
    B = np.zeros((3, Wp * Cin, Lout), np.float32)
    for dy in range(3):
        for kx in range(3):
            for wo in range(W):
                pw_in = wo + kx                      # = (wo+1) - 1 + kx
                c0 = ((wo + 1) if pad_out else wo) * Co
                B[dy, pw_in * Cin:(pw_in + 1) * Cin, c0:c0 + Co] = w_hwio[dy, kx]
    return B


def _channel_projector(C, reps):
    """0/1 matrix that sums a channel over all spatial lanes and broadcasts it back."""
    return np.tile(np.eye(C, dtype=np.float32), (reps, reps))


def conv2d_same_block(x_nchw, params, relu=True):
    """Pallas forward of Conv2dSameBlock. x_nchw: (N, Cin, H, W) float32."""
    w1, b1, g1, be1, w2, b2, g2, be2 = params   # w1:(3,3,Cin,Cin) w2:(3,3,Cin,Cout) HWIO
    del b1, b2  # conv biases cancel exactly against the BN mean subtraction
    N, Cin, H, W = (int(d) for d in x_nchw.shape)
    Cout = int(w2.shape[-1])
    Hp, Wp = H + 2, W + 2
    R, L1, L2 = N * Hp, Wp * Cin, W * Cout

    # ---- parameter / constant preprocessing (host side, one-time) ----
    b1m = _banded_conv_weights(np.asarray(w1, np.float32), W, pad_out=True)
    b2m = _banded_conv_weights(np.asarray(w2, np.float32), W, pad_out=False)
    p1 = _channel_projector(Cin, Wp)
    p2 = _channel_projector(Cout, W)
    g1f = np.tile(np.asarray(g1, np.float32), Wp)[None, :]
    be1f = np.tile(np.asarray(be1, np.float32), Wp)[None, :]
    g2f = np.tile(np.asarray(g2, np.float32), W)[None, :]
    be2f = np.tile(np.asarray(be2, np.float32), W)[None, :]

    ph = np.arange(R) % Hp
    row_ok = ((ph >= 1) & (ph <= H)).astype(np.float32)
    pw = np.arange(L1) // Cin
    col_ok = ((pw >= 1) & (pw <= W)).astype(np.float32)
    mask1 = row_ok[:, None] * col_ok[None, :]
    mask2 = row_ok[:, None] * np.ones((1, L2), np.float32)

    # ---- activation layout: NCHW -> padded NHWC flattened to (N*Hp, Wp*Cin),
    #      plus one extra zero row top/bottom for the row-shifted conv taps ----
    x = jnp.transpose(x_nchw, (0, 2, 3, 1)).astype(jnp.bfloat16)
    xp = jnp.pad(x, ((0, 0), (1, 1), (1, 1), (0, 0))).reshape(R, L1)
    xp = jnp.pad(xp, ((1, 1), (0, 0)))

    args = (xp,
            jnp.asarray(b1m, jnp.bfloat16), jnp.asarray(b2m, jnp.bfloat16),
            jnp.asarray(p1), jnp.asarray(p2),
            jnp.asarray(g1f), jnp.asarray(be1f),
            jnp.asarray(g2f), jnp.asarray(be2f),
            jnp.asarray(mask1), jnp.asarray(mask2))

    vm = pl.BlockSpec(memory_space=pltpu.MemorySpace.VMEM)
    flops = int(6 * R * L1 * (L1 + L2) + 4 * (L1 * L1 + L2 * L2)
                + 20 * R * (L1 + L2))
    bytes_accessed = int(sum(int(a.size) * a.dtype.itemsize for a in args)
                         + R * L2 * 4)

    out_flat = pl.pallas_call(
        functools.partial(_conv2d_same_block_kernel,
                          inv_count=1.0 / float(N * H * W), relu=relu),
        out_shape=jax.ShapeDtypeStruct((R, L2), jnp.float32),
        in_specs=[vm] * len(args),
        out_specs=vm,
        scratch_shapes=[pltpu.VMEM((R + 2 * PADR, L1), jnp.bfloat16)],
        compiler_params=pltpu.CompilerParams(vmem_limit_bytes=32 * 1024 * 1024),
        cost_estimate=pl.CostEstimate(flops=flops,
                                      transcendentals=L1 + L2,
                                      bytes_accessed=bytes_accessed),
    )(*args)

    out = out_flat.reshape(N, Hp, W, Cout)[:, 1:H + 1]   # drop padded border rows
    return jnp.transpose(out, (0, 3, 1, 2))              # back to NCHW


def conv2d_same_block_reference(x_nchw, params, relu=True,
                                matmul_dtype=jnp.float32):
    """Pure-JAX reference (conv -> BN(batch stats) -> ReLU -> conv -> BN -> [ReLU])."""
    w1, b1, g1, be1, w2, b2, g2, be2 = params
    x = jnp.transpose(x_nchw, (0, 2, 3, 1)).astype(jnp.float32)

    def conv(v, w):
        return lax.conv_general_dilated(
            v.astype(matmul_dtype), w.astype(matmul_dtype), (1, 1), 'SAME',
            dimension_numbers=('NHWC', 'HWIO', 'NHWC'),
            preferred_element_type=jnp.float32)

    def bn(v, g, be):
        m = jnp.mean(v, axis=(0, 1, 2), keepdims=True)
        var = jnp.mean((v - m) ** 2, axis=(0, 1, 2), keepdims=True)
        return (v - m) * lax.rsqrt(var + EPS) * g + be

    y = jnp.maximum(bn(conv(x, w1) + b1, g1, be1), 0.0)
    y = bn(conv(y, w2) + b2, g2, be2)
    if relu:
        y = jnp.maximum(y, 0.0)
    return jnp.transpose(y, (0, 3, 1, 2))


if __name__ == "__main__":
    N, Cin, Cout, H, W = 2, 4, 8, 16, 16

    key = jax.random.PRNGKey(0)
    kx, k1, kb1, k2, kb2, kg1, kg2 = jax.random.split(key, 7)

    x = jax.random.normal(kx, (N, Cin, H, W), dtype=jnp.float32)

    # synthetic parameters (HWIO weight layout)
    w1 = 0.1 * jax.random.normal(k1, (3, 3, Cin, Cin), dtype=jnp.float32)
    b1 = 0.05 * jax.random.normal(kb1, (Cin,), dtype=jnp.float32)
    g1 = 1.0 + 0.1 * jax.random.normal(kg1, (Cin,), dtype=jnp.float32)
    be1 = jnp.full((Cin,), 0.01, jnp.float32)

    w2 = 0.1 * jax.random.normal(k2, (3, 3, Cin, Cout), dtype=jnp.float32)
    b2 = 0.05 * jax.random.normal(kb2, (Cout,), dtype=jnp.float32)
    g2 = 1.0 + 0.1 * jax.random.normal(kg2, (Cout,), dtype=jnp.float32)
    be2 = jnp.full((Cout,), -0.01, jnp.float32)

    params = (w1, b1, g1, be1, w2, b2, g2, be2)

    out = jax.block_until_ready(conv2d_same_block(x, params, relu=True))
    assert out.shape == (N, Cout, H, W)

    # tight check against a reference with matching precision
    # (bf16 matmul inputs, f32 accumulation, f32 BN math)
    ref_mp = conv2d_same_block_reference(x, params, relu=True,
                                         matmul_dtype=jnp.bfloat16)
    assert jnp.allclose(out, ref_mp, rtol=3e-2, atol=3e-2), \
        "mismatch vs mixed-precision reference"

    # sanity check against the full-f32 module semantics
    ref_f32 = conv2d_same_block_reference(x, params, relu=True,
                                          matmul_dtype=jnp.float32)
    assert jnp.allclose(out, ref_f32, rtol=1e-1, atol=1e-1), \
        "mismatch vs f32 reference"

    print("KERNEL_OK")
</pallas_src>

<mosaic_0001>
module attributes {stable_mosaic.version = 11 : i64} {
  func.func @_conv2d_same_block_kernel(%arg0: memref<38x72xbf16, #tpu.memory_space<vmem>>, %arg1: memref<3x72x72xbf16, #tpu.memory_space<vmem>>, %arg2: memref<3x72x128xbf16, #tpu.memory_space<vmem>>, %arg3: memref<72x72xf32, #tpu.memory_space<vmem>>, %arg4: memref<128x128xf32, #tpu.memory_space<vmem>>, %arg5: memref<1x72xf32, #tpu.memory_space<vmem>>, %arg6: memref<1x72xf32, #tpu.memory_space<vmem>>, %arg7: memref<1x128xf32, #tpu.memory_space<vmem>>, %arg8: memref<1x128xf32, #tpu.memory_space<vmem>>, %arg9: memref<36x72xf32, #tpu.memory_space<vmem>>, %arg10: memref<36x128xf32, #tpu.memory_space<vmem>>, %arg11: memref<36x128xf32, #tpu.memory_space<vmem>>, %arg12: memref<68x72xbf16, #tpu.memory_space<vmem>>) attributes {dimension_semantics = [], scalar_prefetch = 0 : i64, scratch_operands = 1 : i64, tpu.core_type = #tpu.core_type<tc>} {
    %c0 = arith.constant 0 : index
    %c0_0 = arith.constant 0 : index
    %0 = vector.load %arg9[%c0, %c0_0] : memref<36x72xf32, #tpu.memory_space<vmem>>, vector<36x72xf32>
    %c0_1 = arith.constant 0 : index
    %c0_2 = arith.constant 0 : index
    %1 = vector.load %arg10[%c0_1, %c0_2] : memref<36x128xf32, #tpu.memory_space<vmem>>, vector<36x128xf32>
    %cst = arith.constant 0.000000e+00 : f32
    %2 = vector.broadcast %cst : f32 to vector<36x72xf32>
    %c0_3 = arith.constant 0 : index
    %c0_4 = arith.constant 0 : index
    %3 = vector.load %arg0[%c0_3, %c0_4] : memref<38x72xbf16, #tpu.memory_space<vmem>>, vector<36x72xbf16>
    %c0_5 = arith.constant 0 : index
    %c0_6 = arith.constant 0 : index
    %c0_7 = arith.constant 0 : index
    %4 = vector.load %arg1[%c0_5, %c0_6, %c0_7] : memref<3x72x72xbf16, #tpu.memory_space<vmem>>, vector<1x72x72xbf16>
    %5 = vector.shape_cast %4 : vector<1x72x72xbf16> to vector<72x72xbf16>
    %cst_8 = arith.constant dense<0.000000e+00> : vector<36x72xf32>
    %6 = tpu.matmul %3, %5, %cst_8 {dimension_numbers = #tpu.dot_dimension_numbers<[1], [0], [0], [1], [0, 0, 1, 1], [], []>} : vector<36x72xbf16>, vector<72x72xbf16>, vector<36x72xf32> -> vector<36x72xf32>
    %7 = arith.addf %2, %6 : vector<36x72xf32>
    %c1 = arith.constant 1 : index
    %c0_9 = arith.constant 0 : index
    %8 = vector.load %arg0[%c1, %c0_9] : memref<38x72xbf16, #tpu.memory_space<vmem>>, vector<36x72xbf16>
    %c1_10 = arith.constant 1 : index
    %c0_11 = arith.constant 0 : index
    %c0_12 = arith.constant 0 : index
    %9 = vector.load %arg1[%c1_10, %c0_11, %c0_12] : memref<3x72x72xbf16, #tpu.memory_space<vmem>>, vector<1x72x72xbf16>
    %10 = vector.shape_cast %9 : vector<1x72x72xbf16> to vector<72x72xbf16>
    %cst_13 = arith.constant dense<0.000000e+00> : vector<36x72xf32>
    %11 = tpu.matmul %8, %10, %cst_13 {dimension_numbers = #tpu.dot_dimension_numbers<[1], [0], [0], [1], [0, 0, 1, 1], [], []>} : vector<36x72xbf16>, vector<72x72xbf16>, vector<36x72xf32> -> vector<36x72xf32>
    %12 = arith.addf %7, %11 : vector<36x72xf32>
    %c2 = arith.constant 2 : index
    %c0_14 = arith.constant 0 : index
    %13 = vector.load %arg0[%c2, %c0_14] : memref<38x72xbf16, #tpu.memory_space<vmem>>, vector<36x72xbf16>
    %c2_15 = arith.constant 2 : index
    %c0_16 = arith.constant 0 : index
    %c0_17 = arith.constant 0 : index
    %14 = vector.load %arg1[%c2_15, %c0_16, %c0_17] : memref<3x72x72xbf16, #tpu.memory_space<vmem>>, vector<1x72x72xbf16>
    %15 = vector.shape_cast %14 : vector<1x72x72xbf16> to vector<72x72xbf16>
    %cst_18 = arith.constant dense<0.000000e+00> : vector<36x72xf32>
    %16 = tpu.matmul %13, %15, %cst_18 {dimension_numbers = #tpu.dot_dimension_numbers<[1], [0], [0], [1], [0, 0, 1, 1], [], []>} : vector<36x72xbf16>, vector<72x72xbf16>, vector<36x72xf32> -> vector<36x72xf32>
    %17 = arith.addf %12, %16 : vector<36x72xf32>
    %18 = arith.mulf %17, %0 : vector<36x72xf32>
    %cst_19 = arith.constant dense<0.000000e+00> : vector<72xf32>
    %19 = vector.multi_reduction <add>, %18, %cst_19 [0] : vector<36x72xf32> to vector<72xf32>
    %20 = vector.shape_cast %19 : vector<72xf32> to vector<1x72xf32>
    %c0_20 = arith.constant 0 : index
    %c0_21 = arith.constant 0 : index
    %21 = vector.load %arg3[%c0_20, %c0_21] : memref<72x72xf32, #tpu.memory_space<vmem>>, vector<72x72xf32>
    %cst_22 = arith.constant dense<0.000000e+00> : vector<1x72xf32>
    %22 = tpu.matmul %20, %21, %cst_22 {dimension_numbers = #tpu.dot_dimension_numbers<[1], [0], [0], [1], [0, 0, 1, 1], [], []>} : vector<1x72xf32>, vector<72x72xf32>, vector<1x72xf32> -> vector<1x72xf32>
    %cst_23 = arith.constant 0.001953125 : f32
    %23 = vector.broadcast %cst_23 : f32 to vector<1x72xf32>
    %24 = arith.mulf %22, %23 : vector<1x72xf32>
    %25 = arith.mulf %18, %18 : vector<36x72xf32>
    %cst_24 = arith.constant dense<0.000000e+00> : vector<72xf32>
    %26 = vector.multi_reduction <add>, %25, %cst_24 [0] : vector<36x72xf32> to vector<72xf32>
    %27 = vector.shape_cast %26 : vector<72xf32> to vector<1x72xf32>
    %c0_25 = arith.constant 0 : index
    %c0_26 = arith.constant 0 : index
    %28 = vector.load %arg3[%c0_25, %c0_26] : memref<72x72xf32, #tpu.memory_space<vmem>>, vector<72x72xf32>
    %cst_27 = arith.constant dense<0.000000e+00> : vector<1x72xf32>
    %29 = tpu.matmul %27, %28, %cst_27 {dimension_numbers = #tpu.dot_dimension_numbers<[1], [0], [0], [1], [0, 0, 1, 1], [], []>} : vector<1x72xf32>, vector<72x72xf32>, vector<1x72xf32> -> vector<1x72xf32>
    %cst_28 = arith.constant 0.001953125 : f32
    %30 = vector.broadcast %cst_28 : f32 to vector<1x72xf32>
    %31 = arith.mulf %29, %30 : vector<1x72xf32>
    %c0_29 = arith.constant 0 : index
    %c0_30 = arith.constant 0 : index
    %32 = vector.load %arg5[%c0_29, %c0_30] : memref<1x72xf32, #tpu.memory_space<vmem>>, vector<1x72xf32>
    %33 = arith.mulf %24, %24 : vector<1x72xf32>
    %34 = arith.subf %31, %33 : vector<1x72xf32>
    %cst_31 = arith.constant 9.99999974E-6 : f32
    %35 = vector.broadcast %cst_31 : f32 to vector<1x72xf32>
    %36 = arith.addf %34, %35 : vector<1x72xf32>
    %37 = math.rsqrt %36 : vector<1x72xf32>
    %38 = arith.mulf %32, %37 : vector<1x72xf32>
    %c0_32 = arith.constant 0 : index
    %c0_33 = arith.constant 0 : index
    %39 = vector.load %arg6[%c0_32, %c0_33] : memref<1x72xf32, #tpu.memory_space<vmem>>, vector<1x72xf32>
    %40 = arith.mulf %24, %38 : vector<1x72xf32>
    %41 = arith.subf %39, %40 : vector<1x72xf32>
    %42 = vector.broadcast %38 : vector<1x72xf32> to vector<36x72xf32>
    %43 = arith.mulf %18, %42 : vector<36x72xf32>
    %44 = vector.broadcast %41 : vector<1x72xf32> to vector<36x72xf32>
    %45 = arith.addf %43, %44 : vector<36x72xf32>
    %cst_34 = arith.constant 0.000000e+00 : f32
    %46 = vector.broadcast %cst_34 : f32 to vector<36x72xf32>
    %47 = arith.maximumf %45, %46 : vector<36x72xf32>
    %48 = arith.mulf %47, %0 : vector<36x72xf32>
    %cst_35 = arith.constant 0.000000e+00 : bf16
    %49 = vector.broadcast %cst_35 : bf16 to vector<16x72xbf16>
    %c0_36 = arith.constant 0 : index
    %c0_37 = arith.constant 0 : index
    %50 = vector.load %arg12[%c0_36, %c0_37] : memref<68x72xbf16, #tpu.memory_space<vmem>>, vector<16x72xbf16>
    tpu.vector_store %arg12[%c0_36, %c0_37], %49 {strides = array<i32>} : memref<68x72xbf16, #tpu.memory_space<vmem>>, vector<16x72xbf16>,
    %cst_38 = arith.constant 0.000000e+00 : bf16
    %51 = vector.broadcast %cst_38 : bf16 to vector<16x72xbf16>
    %c52 = arith.constant 52 : index
    %c0_39 = arith.constant 0 : index
    %52 = vector.load %arg12[%c52, %c0_39] : memref<68x72xbf16, #tpu.memory_space<vmem>>, vector<16x72xbf16>
    tpu.vector_store %arg12[%c52, %c0_39], %51 {strides = array<i32>} : memref<68x72xbf16, #tpu.memory_space<vmem>>, vector<16x72xbf16>,
    %53 = arith.truncf %48 : vector<36x72xf32> to vector<36x72xbf16>
    %c16 = arith.constant 16 : index
    %c0_40 = arith.constant 0 : index
    %54 = vector.load %arg12[%c16, %c0_40] : memref<68x72xbf16, #tpu.memory_space<vmem>>, vector<36x72xbf16>
    tpu.vector_store %arg12[%c16, %c0_40], %53 {strides = array<i32>} : memref<68x72xbf16, #tpu.memory_space<vmem>>, vector<36x72xbf16>,
    %cst_41 = arith.constant 0.000000e+00 : f32
    %55 = vector.broadcast %cst_41 : f32 to vector<36x128xf32>
    %c15 = arith.constant 15 : index
    %c0_42 = arith.constant 0 : index
    %56 = vector.load %arg12[%c15, %c0_42] : memref<68x72xbf16, #tpu.memory_space<vmem>>, vector<36x72xbf16>
    %c0_43 = arith.constant 0 : index
    %c0_44 = arith.constant 0 : index
    %c0_45 = arith.constant 0 : index
    %57 = vector.load %arg2[%c0_43, %c0_44, %c0_45] : memref<3x72x128xbf16, #tpu.memory_space<vmem>>, vector<1x72x128xbf16>
    %58 = vector.shape_cast %57 : vector<1x72x128xbf16> to vector<72x128xbf16>
    %cst_46 = arith.constant dense<0.000000e+00> : vector<36x128xf32>
    %59 = tpu.matmul %56, %58, %cst_46 {dimension_numbers = #tpu.dot_dimension_numbers<[1], [0], [0], [1], [0, 0, 1, 1], [], []>} : vector<36x72xbf16>, vector<72x128xbf16>, vector<36x128xf32> -> vector<36x128xf32>
    %60 = arith.addf %55, %59 : vector<36x128xf32>
    %c16_47 = arith.constant 16 : index
    %c0_48 = arith.constant 0 : index
    %61 = vector.load %arg12[%c16_47, %c0_48] : memref<68x72xbf16, #tpu.memory_space<vmem>>, vector<36x72xbf16>
    %c1_49 = arith.constant 1 : index
    %c0_50 = arith.constant 0 : index
    %c0_51 = arith.constant 0 : index
    %62 = vector.load %arg2[%c1_49, %c0_50, %c0_51] : memref<3x72x128xbf16, #tpu.memory_space<vmem>>, vector<1x72x128xbf16>
    %63 = vector.shape_cast %62 : vector<1x72x128xbf16> to vector<72x128xbf16>
    %cst_52 = arith.constant dense<0.000000e+00> : vector<36x128xf32>
    %64 = tpu.matmul %61, %63, %cst_52 {dimension_numbers = #tpu.dot_dimension_numbers<[1], [0], [0], [1], [0, 0, 1, 1], [], []>} : vector<36x72xbf16>, vector<72x128xbf16>, vector<36x128xf32> -> vector<36x128xf32>
    %65 = arith.addf %60, %64 : vector<36x128xf32>
    %c17 = arith.constant 17 : index
    %c0_53 = arith.constant 0 : index
    %66 = vector.load %arg12[%c17, %c0_53] : memref<68x72xbf16, #tpu.memory_space<vmem>>, vector<36x72xbf16>
    %c2_54 = arith.constant 2 : index
    %c0_55 = arith.constant 0 : index
    %c0_56 = arith.constant 0 : index
    %67 = vector.load %arg2[%c2_54, %c0_55, %c0_56] : memref<3x72x128xbf16, #tpu.memory_space<vmem>>, vector<1x72x128xbf16>
    %68 = vector.shape_cast %67 : vector<1x72x128xbf16> to vector<72x128xbf16>
    %cst_57 = arith.constant dense<0.000000e+00> : vector<36x128xf32>
    %69 = tpu.matmul %66, %68, %cst_57 {dimension_numbers = #tpu.dot_dimension_numbers<[1], [0], [0], [1], [0, 0, 1, 1], [], []>} : vector<36x72xbf16>, vector<72x128xbf16>, vector<36x128xf32> -> vector<36x128xf32>
    %70 = arith.addf %65, %69 : vector<36x128xf32>
    %71 = arith.mulf %70, %1 : vector<36x128xf32>
    %cst_58 = arith.constant dense<0.000000e+00> : vector<128xf32>
    %72 = vector.multi_reduction <add>, %71, %cst_58 [0] : vector<36x128xf32> to vector<128xf32>
    %73 = vector.shape_cast %72 : vector<128xf32> to vector<1x128xf32>
    %c0_59 = arith.constant 0 : index
    %c0_60 = arith.constant 0 : index
    %74 = vector.load %arg4[%c0_59, %c0_60] : memref<128x128xf32, #tpu.memory_space<vmem>>, vector<128x128xf32>
    %cst_61 = arith.constant dense<0.000000e+00> : vector<1x128xf32>
    %75 = tpu.matmul %73, %74, %cst_61 {dimension_numbers = #tpu.dot_dimension_numbers<[1], [0], [0], [1], [0, 0, 1, 1], [], []>} : vector<1x128xf32>, vector<128x128xf32>, vector<1x128xf32> -> vector<1x128xf32>
    %cst_62 = arith.constant 0.001953125 : f32
    %76 = vector.broadcast %cst_62 : f32 to vector<1x128xf32>
    %77 = arith.mulf %75, %76 : vector<1x128xf32>
    %78 = arith.mulf %71, %71 : vector<36x128xf32>
    %cst_63 = arith.constant dense<0.000000e+00> : vector<128xf32>
    %79 = vector.multi_reduction <add>, %78, %cst_63 [0] : vector<36x128xf32> to vector<128xf32>
    %80 = vector.shape_cast %79 : vector<128xf32> to vector<1x128xf32>
    %c0_64 = arith.constant 0 : index
    %c0_65 = arith.constant 0 : index
    %81 = vector.load %arg4[%c0_64, %c0_65] : memref<128x128xf32, #tpu.memory_space<vmem>>, vector<128x128xf32>
    %cst_66 = arith.constant dense<0.000000e+00> : vector<1x128xf32>
    %82 = tpu.matmul %80, %81, %cst_66 {dimension_numbers = #tpu.dot_dimension_numbers<[1], [0], [0], [1], [0, 0, 1, 1], [], []>} : vector<1x128xf32>, vector<128x128xf32>, vector<1x128xf32> -> vector<1x128xf32>
    %cst_67 = arith.constant 0.001953125 : f32
    %83 = vector.broadcast %cst_67 : f32 to vector<1x128xf32>
    %84 = arith.mulf %82, %83 : vector<1x128xf32>
    %c0_68 = arith.constant 0 : index
    %c0_69 = arith.constant 0 : index
    %85 = vector.load %arg7[%c0_68, %c0_69] : memref<1x128xf32, #tpu.memory_space<vmem>>, vector<1x128xf32>
    %86 = arith.mulf %77, %77 : vector<1x128xf32>
    %87 = arith.subf %84, %86 : vector<1x128xf32>
    %cst_70 = arith.constant 9.99999974E-6 : f32
    %88 = vector.broadcast %cst_70 : f32 to vector<1x128xf32>
    %89 = arith.addf %87, %88 : vector<1x128xf32>
    %90 = math.rsqrt %89 : vector<1x128xf32>
    %91 = arith.mulf %85, %90 : vector<1x128xf32>
    %c0_71 = arith.constant 0 : index
    %c0_72 = arith.constant 0 : index
    %92 = vector.load %arg8[%c0_71, %c0_72] : memref<1x128xf32, #tpu.memory_space<vmem>>, vector<1x128xf32>
    %93 = arith.mulf %77, %91 : vector<1x128xf32>
    %94 = arith.subf %92, %93 : vector<1x128xf32>
    %95 = vector.broadcast %91 : vector<1x128xf32> to vector<36x128xf32>
    %96 = arith.mulf %71, %95 : vector<36x128xf32>
    %97 = vector.broadcast %94 : vector<1x128xf32> to vector<36x128xf32>
    %98 = arith.addf %96, %97 : vector<36x128xf32>
    %cst_73 = arith.constant 0.000000e+00 : f32
    %99 = vector.broadcast %cst_73 : f32 to vector<36x128xf32>
    %100 = arith.maximumf %98, %99 : vector<36x128xf32>
    %c0_74 = arith.constant 0 : index
    %c0_75 = arith.constant 0 : index
    %101 = vector.load %arg11[%c0_74, %c0_75] : memref<36x128xf32, #tpu.memory_space<vmem>>, vector<36x128xf32>
    tpu.vector_store %arg11[%c0_74, %c0_75], %100 {strides = array<i32>} : memref<36x128xf32, #tpu.memory_space<vmem>>, vector<36x128xf32>,
    return
  }
}

</mosaic_0001>

<llo_original>
// kernel: tpu_custom_call.1
$region0: #{tpu_custom_call.1}
  #allocation0 [shape = 'u32[]', space=smem, size = 0x4, offset = 0x4, fixed_abs, tag = 'smem constant byte address 0x4 - core index']
  #allocation1 [shape = 'u32[144,128]{1,0:T(1,128)}', space=vmem, size = 0x12000, scoped, tag = 'internal scratch']
  #allocation2 [shape = 'bf16[68,72]{1,0:T(8,128)(2,1)}', space=vmem, size = 0x4800, scoped, tag = 'scratch operand']
  %s0 = inlined_call_operand.hbm [shape: bf16[38,72], index: 0, kind: input, shape index: {}]
  %s1 = inlined_call_operand.hbm [shape: bf16[3,72,72], index: 1, kind: input, shape index: {}]
  %s2 = inlined_call_operand.hbm [shape: bf16[3,72,128], index: 2, kind: input, shape index: {}]
  %s3 = inlined_call_operand.hbm [shape: f32[72,72], index: 3, kind: input, shape index: {}]
  %s4 = inlined_call_operand.hbm [shape: f32[128,128], index: 4, kind: input, shape index: {}]
  %s5 = inlined_call_operand.vmem [shape: f32[1,72], index: 5, kind: input, shape index: {}]
  %s6 = inlined_call_operand.vmem [shape: f32[1,72], index: 6, kind: input, shape index: {}]
  %s7 = inlined_call_operand.vmem [shape: f32[1,128], index: 7, kind: input, shape index: {}]
  %s8 = inlined_call_operand.vmem [shape: f32[1,128], index: 8, kind: input, shape index: {}]
  %s9 = inlined_call_operand.hbm [shape: f32[36,72], index: 9, kind: input, shape index: {}]
  %s10 = inlined_call_operand.hbm [shape: f32[36,128], index: 10, kind: input, shape index: {}]
  %s11 = inlined_call_operand.hbm [shape: f32[36,128], index: 11, kind: output, shape index: {}]
  %s12 = sld [smem:[#allocation0]]
  $region82: #{tpu_custom_call.1} parent=0
    _
  %s14 = ssub.s32 1, %s12
  %s15 = scalar_select 0, %s14, %s12
  $region1: #{tpu_custom_call.1} parent=0
    #allocation3 [shape = 'u8[10240]{0}', space=vmem, size = 0x2800, scoped, tag = 'input window, operand 0, single buffered']
    #allocation4 [shape = 's32[1]{0}', space=sflag, size = 0x4, scoped, tag = 'scoped memory for tpu_custom_call.1']
    #allocation5 [shape = 's32[1]{0}', space=sflag, size = 0x4, scoped, tag = 'scoped memory for tpu_custom_call.1']
    #allocation6 [shape = 'u8[55296]{0}', space=vmem, size = 0xd800, scoped, tag = 'input window, operand 1, single buffered']
    #allocation7 [shape = 's32[1]{0}', space=sflag, size = 0x4, scoped, tag = 'scoped memory for tpu_custom_call.1']
    #allocation8 [shape = 'u8[55296]{0}', space=vmem, size = 0xd800, scoped, tag = 'input window, operand 2, single buffered']
    #allocation9 [shape = 'u8[36864]{0}', space=vmem, size = 0x9000, scoped, tag = 'input window, operand 3, single buffered']
    #allocation10 [shape = 's32[1]{0}', space=sflag, size = 0x4, scoped, tag = 'scoped memory for tpu_custom_call.1']
    #allocation11 [shape = 'u8[65536]{0}', space=vmem, size = 0x10000, scoped, tag = 'input window, operand 4, single buffered']
    #allocation12 [shape = 'u8[20480]{0}', space=vmem, size = 0x5000, scoped, tag = 'input window, operand 9, single buffered']
    #allocation13 [shape = 's32[1]{0}', space=sflag, size = 0x4, scoped, tag = 'scoped memory for tpu_custom_call.1']
    #allocation14 [shape = 'u8[20480]{0}', space=vmem, size = 0x5000, scoped, tag = 'input window, operand 10, single buffered']
    #allocation15 [shape = 'u8[20480]{0}', space=vmem, size = 0x5000, scoped, tag = 'output window, operand 0, single buffered']
    %16 = vsyncpa [#allocation4], 0
    %17 = vsyncpa [#allocation7], 0
    %18 = vsyncpa [#allocation10], 0
    %19 = vsyncpa [#allocation13], 0
    %20 = vsyncpa [#allocation5], 0
    // Predicated region
    $region2: #{tpu_custom_call.1} parent=1 // pred_check
      _
    $region3: #{tpu_custom_call.1} parent=1 // pred_check_branch
      %22 = sbr.rel (0) target = $region5
    $region4: #{tpu_custom_call.1} parent=1 // pred_region
      %s24 = ssub.s32 320, 320
      %25 = vsyncadd [#allocation4], %s24
      %s26 = sshll.u32 [#allocation3], 4
      %s27 = int_to_ptr.vmem [resolvable:$true] %s26
      %32 = dma.hbm_to_vmem [thread:$0]  %s0, 320, %s27, [#allocation4], 64, 64, 4
    $region5: #{tpu_custom_call.1} parent=1 // pred_fallthru
      _
    // Predicated region
    $region6: #{tpu_custom_call.1} parent=1 // pred_check
      _
    $region7: #{tpu_custom_call.1} parent=1 // pred_check_branch
      %34 = sbr.rel (0) target = $region9
    $region8: #{tpu_custom_call.1} parent=1 // pred_region
      %s36 = ssub.s32 1728, 1728
      %37 = vsyncadd [#allocation7], %s36
      %s38 = sshll.u32 [#allocation6], 4
      %s39 = int_to_ptr.vmem [resolvable:$true] %s38
      %44 = dma.hbm_to_vmem [thread:$0]  %s1, 1728, %s39, [#allocation7], 64, 64, 4
    $region9: #{tpu_custom_call.1} parent=1 // pred_fallthru
      _
    // Predicated region
    $region10: #{tpu_custom_call.1} parent=1 // pred_check
      _
    $region11: #{tpu_custom_call.1} parent=1 // pred_check_branch
      %46 = sbr.rel (0) target = $region13
    $region12: #{tpu_custom_call.1} parent=1 // pred_region
      %s48 = ssub.s32 1728, 1728
      %49 = vsyncadd [#allocation7], %s48
      %s50 = sshll.u32 [#allocation8], 4
      %s51 = int_to_ptr.vmem [resolvable:$true] %s50
      %56 = dma.hbm_to_vmem [thread:$0]  %s2, 1728, %s51, [#allocation7], 64, 64, 4
    $region13: #{tpu_custom_call.1} parent=1 // pred_fallthru
      _
    // Predicated region
    $region14: #{tpu_custom_call.1} parent=1 // pred_check
      _
    $region15: #{tpu_custom_call.1} parent=1 // pred_check_branch
      %58 = sbr.rel (0) target = $region17
    $region16: #{tpu_custom_call.1} parent=1 // pred_region
      %s60 = ssub.s32 1152, 1152
      %61 = vsyncadd [#allocation10], %s60
      %s62 = sshll.u32 [#allocation9], 4
      %s63 = int_to_ptr.vmem [resolvable:$true] %s62
      %68 = dma.hbm_to_vmem [thread:$0]  %s3, 1152, %s63, [#allocation10], 128, 128, 8
    $region17: #{tpu_custom_call.1} parent=1 // pred_fallthru
      _
    // Predicated region
    $region18: #{tpu_custom_call.1} parent=1 // pred_check
      _
    $region19: #{tpu_custom_call.1} parent=1 // pred_check_branch
      %70 = sbr.rel (0) target = $region21
    $region20: #{tpu_custom_call.1} parent=1 // pred_region
      %s72 = ssub.s32 2048, 2048
      %73 = vsyncadd [#allocation10], %s72
      %s74 = sshll.u32 [#allocation11], 4
      %s75 = int_to_ptr.vmem [resolvable:$true] %s74
      %80 = dma.hbm_to_vmem [thread:$0]  %s4, 2048, %s75, [#allocation10], 128, 128, 8
    $region21: #{tpu_custom_call.1} parent=1 // pred_fallthru
      _
    // Predicated region
    $region22: #{tpu_custom_call.1} parent=1 // pred_check
      _
    $region23: #{tpu_custom_call.1} parent=1 // pred_check_branch
      %82 = sbr.rel (0) target = $region25
    $region24: #{tpu_custom_call.1} parent=1 // pred_region
      _
    $region25: #{tpu_custom_call.1} parent=1 // pred_fallthru
      _
    // Predicated region
    $region26: #{tpu_custom_call.1} parent=1 // pred_check
      _
    $region27: #{tpu_custom_call.1} parent=1 // pred_check_branch
      %84 = sbr.rel (0) target = $region29
    $region28: #{tpu_custom_call.1} parent=1 // pred_region
      _
    $region29: #{tpu_custom_call.1} parent=1 // pred_fallthru
      _
    // Predicated region
    $region30: #{tpu_custom_call.1} parent=1 // pred_check
      _
    $region31: #{tpu_custom_call.1} parent=1 // pred_check_branch
      %86 = sbr.rel (0) target = $region33
    $region32: #{tpu_custom_call.1} parent=1 // pred_region
      _
    $region33: #{tpu_custom_call.1} parent=1 // pred_fallthru
      _
    // Predicated region
    $region34: #{tpu_custom_call.1} parent=1 // pred_check
      _
    $region35: #{tpu_custom_call.1} parent=1 // pred_check_branch
      %88 = sbr.rel (0) target = $region37
    $region36: #{tpu_custom_call.1} parent=1 // pred_region
      _
    $region37: #{tpu_custom_call.1} parent=1 // pred_fallthru
      _
    // Predicated region
    $region38: #{tpu_custom_call.1} parent=1 // pred_check
      _
    $region39: #{tpu_custom_call.1} parent=1 // pred_check_branch
      %90 = sbr.rel (0) target = $region41
    $region40: #{tpu_custom_call.1} parent=1 // pred_region
      %s92 = ssub.s32 640, 640
      %93 = vsyncadd [#allocation13], %s92
      %s94 = sshll.u32 [#allocation12], 4
      %s95 = int_to_ptr.vmem [resolvable:$true] %s94
      %100 = dma.hbm_to_vmem [thread:$0]  %s9, 640, %s95, [#allocation13], 128, 128, 8
    $region41: #{tpu_custom_call.1} parent=1 // pred_fallthru
      _
    // Predicated region
    $region42: #{tpu_custom_call.1} parent=1 // pred_check
      _
    $region43: #{tpu_custom_call.1} parent=1 // pred_check_branch
      %102 = sbr.rel (0) target = $region45
    $region44: #{tpu_custom_call.1} parent=1 // pred_region
      %s104 = ssub.s32 640, 640
      %105 = vsyncadd [#allocation13], %s104
      %s106 = sshll.u32 [#allocation14], 4
      %s107 = int_to_ptr.vmem [resolvable:$true] %s106
      %112 = dma.hbm_to_vmem [thread:$0]  %s10, 640, %s107, [#allocation13], 128, 128, 8
    $region45: #{tpu_custom_call.1} parent=1 // pred_fallthru
      _
    // Predicated region
    $region46: #{tpu_custom_call.1} parent=1 // pred_check
      _
    $region47: #{tpu_custom_call.1} parent=1 // pred_check_branch
      %114 = sbr.rel (0) target = $region49
    $region48: #{tpu_custom_call.1} parent=1 // pred_region
      %115 = dma.done [#allocation4], 320
    $region49: #{tpu_custom_call.1} parent=1 // pred_fallthru
      _
    // Predicated region
    $region50: #{tpu_custom_call.1} parent=1 // pred_check
      _
    $region51: #{tpu_custom_call.1} parent=1 // pred_check_branch
      %117 = sbr.rel (0) target = $region53
    $region52: #{tpu_custom_call.1} parent=1 // pred_region
      %118 = dma.done [#allocation7], 1728
    $region53: #{tpu_custom_call.1} parent=1 // pred_fallthru
      _
    // Predicated region
    $region54: #{tpu_custom_call.1} parent=1 // pred_check
      _
    $region55: #{tpu_custom_call.1} parent=1 // pred_check_branch
      %120 = sbr.rel (0) target = $region57
    $region56: #{tpu_custom_call.1} parent=1 // pred_region
      %121 = dma.done [#allocation7], 1728
    $region57: #{tpu_custom_call.1} parent=1 // pred_fallthru
      _
    // Predicated region
    $region58: #{tpu_custom_call.1} parent=1 // pred_check
      _
    $region59: #{tpu_custom_call.1} parent=1 // pred_check_branch
      %123 = sbr.rel (0) target = $region61
    $region60: #{tpu_custom_call.1} parent=1 // pred_region
      %124 = dma.done [#allocation10], 1152
    $region61: #{tpu_custom_call.1} parent=1 // pred_fallthru
      _
    // Predicated region
    $region62: #{tpu_custom_call.1} parent=1 // pred_check
      _
    $region63: #{tpu_custom_call.1} parent=1 // pred_check_branch
      %126 = sbr.rel (0) target = $region65
    $region64: #{tpu_custom_call.1} parent=1 // pred_region
      %127 = dma.done [#allocation10], 2048
    $region65: #{tpu_custom_call.1} parent=1 // pred_fallthru
      _
    // Predicated region
    $region66: #{tpu_custom_call.1} parent=1 // pred_check
      _
    $region67: #{tpu_custom_call.1} parent=1 // pred_check_branch
      %129 = sbr.rel (0) target = $region69
    $region68: #{tpu_custom_call.1} parent=1 // pred_region
      %130 = dma.done [#allocation13], 640
    $region69: #{tpu_custom_call.1} parent=1 // pred_fallthru
      _
    // Predicated region
    $region70: #{tpu_custom_call.1} parent=1 // pred_check
      _
    $region71: #{tpu_custom_call.1} parent=1 // pred_check_branch
      %132 = sbr.rel (0) target = $region73
    $region72: #{tpu_custom_call.1} parent=1 // pred_region
      %133 = dma.done [#allocation13], 640
    $region73: #{tpu_custom_call.1} parent=1 // pred_fallthru
      _
    %v135 = vld [vmem:[#allocation12] sm:$0xff]
    %v136 = vld [vmem:[#allocation12 + $0x8] sm:$0xff]
    %v137 = vld [vmem:[#allocation12 + $0x10] sm:$0xff]
    %v138 = vld [vmem:[#allocation12 + $0x18] sm:$0xff]
    %v139 = vld [vmem:[#allocation12 + $0x20] sm:$0xf]
    %v140 = vld [vmem:[#allocation14] sm:$0xff]
    %v141 = vld [vmem:[#allocation14 + $0x8] sm:$0xff]
    %v142 = vld [vmem:[#allocation14 + $0x10] sm:$0xff]
    %v143 = vld [vmem:[#allocation14 + $0x18] sm:$0xff]
    %v144 = vld [vmem:[#allocation14 + $0x20] sm:$0xf]
    %v145 = vld [vmem:[#allocation3] sm:$0xf]
    %v146 = vld [vmem:[#allocation3 + $0x4] sm:$0xf]
    %v147 = vld [vmem:[#allocation3 + $0x8] sm:$0xf]
    %v148 = vld [vmem:[#allocation3 + $0xc] sm:$0xf]
    %v149 = vld [vmem:[#allocation3 + $0x10] sm:$0x3]
    %v150 = vld [vmem:[#allocation6] sm:$0xf]
    %v151 = vld [vmem:[#allocation6 + $0x4] sm:$0xf]
    %v152 = vld [vmem:[#allocation6 + $0x8] sm:$0xf]
    %v153 = vld [vmem:[#allocation6 + $0xc] sm:$0xf]
    %v154 = vld [vmem:[#allocation6 + $0x10] sm:$0xf]
    %v155 = vld [vmem:[#allocation6 + $0x14] sm:$0xf]
    %v156 = vld [vmem:[#allocation6 + $0x18] sm:$0xf]
    %v157 = vld [vmem:[#allocation6 + $0x1c] sm:$0xf]
    %v158 = vld [vmem:[#allocation6 + $0x20] sm:$0xf]
    %v159 = vld [vmem:[#allocation3 + $0x10] sm:$0x7]
    %s160 = scalar_lea.vmem [#allocation6], 36
    %v161 = vld [vmem:[%s160] sm:$0xf]
    %v162 = vld [vmem:[%s160 + $0x4] sm:$0xf]
    %v163 = vld [vmem:[%s160 + $0x8] sm:$0xf]
    %v164 = vld [vmem:[%s160 + $0xc] sm:$0xf]
    %v165 = vld [vmem:[%s160 + $0x10] sm:$0xf]
    %v166 = vld [vmem:[%s160 + $0x14] sm:$0xf]
    %v167 = vld [vmem:[%s160 + $0x18] sm:$0xf]
    %v168 = vld [vmem:[%s160 + $0x1c] sm:$0xf]
    %v169 = vld [vmem:[%s160 + $0x20] sm:$0xf]
    %v175 = vunpack.c.l.b16 %v145
    %v176 = vunpack.c.l.b16 %v146
    %v177 = vunpack.c.l.b16 %v147
    %v178 = vunpack.c.l.b16 %v148
    %v179 = vunpack.c.l.b16 %v159
    %v180 = vpack.c.b16 %v176, %v175
    %v181 = vpack.c.b16 %v178, %v177
    %v182 = vpack.c.b16 %v179, %v179
    %vm183 = vsmask.f32 7424
    %v185 = vshrl.u32 %v180, 16
    %v187 = vshll.u32 %v180, 16
    %v189 = vrot.slane %v187, 1
    %v190 = vor.u32 %v185, %v189
    %v192 = vshll.u32 %v181, 16
    %v194 = vrot.slane %v192, 1
    %v195 = vsel %vm183, %v190, %v194
    %v196 = vshrl.u32 %v181, 16
    %v198 = vor.u32 %v196, %v194
    %v200 = vshll.u32 %v182, 16
    %v202 = vrot.slane %v200, 1
    %v203 = vsel %vm183, %v198, %v202
    %v204 = vshrl.u32 %v182, 16
    %v206 = vor.u32 %v204, %v202
    %v216 = vunpack.c.l.b16 %v161
    %v217 = vunpack.c.l.b16 %v162
    %v218 = vunpack.c.l.b16 %v163
    %v219 = vunpack.c.l.b16 %v164
    %v220 = vunpack.c.l.b16 %v165
    %v221 = vunpack.c.l.b16 %v166
    %v222 = vunpack.c.l.b16 %v167
    %v223 = vunpack.c.l.b16 %v168
    %v224 = vunpack.c.l.b16 %v169
    %v225 = vpack.c.b16 %v217, %v216
    %v226 = vpack.c.b16 %v219, %v218
    %v227 = vpack.c.b16 %v221, %v220
    %v228 = vpack.c.b16 %v223, %v222
    %v229 = vpack.c.b16 %v224, %v224
    %vm234 = vcmask 588800
    %v236 = vsel %vm234, %v195, 0
    %v239 = vsel %vm234, %v203, 0
    %v242 = vsel %vm234, %v206, 0
    %vm244 = vcmask 1043456
    %v246 = vsel %vm244, %v229, 0
    %248 = vmatprep.subr.bf16.mxu0 0
    %249 = vmatpush1.bf16.msra.mxu0 %v225
    %250 = vmatprep.subr.bf16.mxu0 0
    %251 = vmatpush1.bf16.msra.mxu0 %v226
    %252 = vmatprep.subr.bf16.mxu0 0
    %253 = vmatpush1.bf16.msra.mxu0 %v227
    %254 = vmatprep.subr.bf16.mxu0 0
    %255 = vmatpush1.bf16.msra.mxu0 %v228
    %256 = vmatprep.subr.bf16.mxu0 0
    %257 = vmatpush1.bf16.msra.mxu0 %v246
    %258 = vmatprep.subr.bf16.mxu0 0
    %259 = vmatpush1.bf16.msra.mxu0 0
    %260 = vmatprep.subr.bf16.mxu0 0
    %261 = vmatpush1.bf16.msra.mxu0 0
    %262 = vmatprep.subr.bf16.mxu0 0
    %263 = vmatpush1.bf16.msra.mxu0 0
    %264 = vmatprep.subr.bf16.mxu0 0
    %265 = vmatpush1.bf16.msra.mxu0 0
    %266 = vmatprep.subr.bf16.mxu0 0
    %267 = vmatpush1.bf16.msra.mxu0 0
    %268 = vmatprep.subr.bf16.mxu0 0
    %269 = vmatpush1.bf16.msra.mxu0 0
    %270 = vmatprep.subr.bf16.mxu0 0
    %271 = vmatpush1.bf16.msra.mxu0 0
    %272 = vmatprep.subr.bf16.mxu0 0
    %273 = vmatpush1.bf16.msra.mxu0 0
    %274 = vmatprep.subr.bf16.mxu0 0
    %275 = vmatpush1.bf16.msra.mxu0 0
    %276 = vmatprep.subr.bf16.mxu0 0
    %277 = vmatpush1.bf16.msra.mxu0 0
    %278 = vmatprep.subr.bf16.mxu0 0
    %279 = vmatpush1.bf16.msra.mxu0 0
    %280 = vmatprep.mubr.bf16.mxu0 0
    %281 = vmatmul.mubr.bf16.gmra.mrb[0].mxu0 %v236
    %v282 = vpop.f32.mrb[0].mxu0
    %v283 = vadd.f32 0.0, %v282
    %v284 = vpop.f32.mrb[0].mxu0
    %v285 = vpop.f32.mrb[0].mxu0
    %v286 = vadd.f32 0.0, %v285
    %v287 = vpop.f32.mrb[0].mxu0
    %288 = vmatprep.mubr.bf16.mxu0 0
    %289 = vmatmul.mubr.bf16.gmra.mrb[0].mxu0 %v239
    %v290 = vpop.f32.mrb[0].mxu0
    %v291 = vadd.f32 0.0, %v290
    %v292 = vpop.f32.mrb[0].mxu0
    %v293 = vpop.f32.mrb[0].mxu0
    %v294 = vadd.f32 0.0, %v293
    %v295 = vpop.f32.mrb[0].mxu0
    %296 = vmatprep.mubr.bf16.mxu0 0
    %297 = vmatmul.mubr.bf16.gmra.mrb[0].mxu0 %v242
    %v298 = vpop.f32.mrb[0].mxu0
    %v299 = vadd.f32 0.0, %v298
    %v300 = vpop.f32.mrb[0].mxu0
    %v301 = vpop.f32.mrb[0].mxu0
    %v302 = vpop.f32.mrb[0].mxu0
    %303 = vdwg.mxu0
    %v305 = vunpack.c.l.b16 %v149
    %v306 = vpack.c.b16 %v305, %v305
    %v316 = vunpack.c.l.b16 %v150
    %v317 = vunpack.c.l.b16 %v151
    %v318 = vunpack.c.l.b16 %v152
    %v319 = vunpack.c.l.b16 %v153
    %v320 = vunpack.c.l.b16 %v154
    %v321 = vunpack.c.l.b16 %v155
    %v322 = vunpack.c.l.b16 %v156
    %v323 = vunpack.c.l.b16 %v157
    %v324 = vunpack.c.l.b16 %v158
    %v325 = vpack.c.b16 %v317, %v316
    %v326 = vpack.c.b16 %v319, %v318
    %v327 = vpack.c.b16 %v321, %v320
    %v328 = vpack.c.b16 %v323, %v322
    %v329 = vpack.c.b16 %v324, %v324
    %v334 = vsel %vm234, %v180, 0
    %v336 = vsel %vm234, %v181, 0
    %v339 = vsel %vm234, %v306, 0
    %v342 = vsel %vm244, %v329, 0
    %344 = vmatprep.subr.bf16.mxu0 0
    %345 = vmatpush1.bf16.msra.mxu0 %v325
    %346 = vmatprep.subr.bf16.mxu0 0
    %347 = vmatpush1.bf16.msra.mxu0 %v326
    %348 = vmatprep.subr.bf16.mxu0 0
    %349 = vmatpush1.bf16.msra.mxu0 %v327
    %350 = vmatprep.subr.bf16.mxu0 0
    %351 = vmatpush1.bf16.msra.mxu0 %v328
    %352 = vmatprep.subr.bf16.mxu0 0
    %353 = vmatpush1.bf16.msra.mxu0 %v342
    %354 = vmatprep.subr.bf16.mxu0 0
    %355 = vmatpush1.bf16.msra.mxu0 0
    %356 = vmatprep.subr.bf16.mxu0 0
    %357 = vmatpush1.bf16.msra.mxu0 0
    %358 = vmatprep.subr.bf16.mxu0 0
    %359 = vmatpush1.bf16.msra.mxu0 0
    %360 = vmatprep.subr.bf16.mxu0 0
    %361 = vmatpush1.bf16.msra.mxu0 0
    %362 = vmatprep.subr.bf16.mxu0 0
    %363 = vmatpush1.bf16.msra.mxu0 0
    %364 = vmatprep.subr.bf16.mxu0 0
    %365 = vmatpush1.bf16.msra.mxu0 0
    %366 = vmatprep.subr.bf16.mxu0 0
    %367 = vmatpush1.bf16.msra.mxu0 0
    %368 = vmatprep.subr.bf16.mxu0 0
    %369 = vmatpush1.bf16.msra.mxu0 0
    %370 = vmatprep.subr.bf16.mxu0 0
    %371 = vmatpush1.bf16.msra.mxu0 0
    %372 = vmatprep.subr.bf16.mxu0 0
    %373 = vmatpush1.bf16.msra.mxu0 0
    %374 = vmatprep.subr.bf16.mxu0 0
    %375 = vmatpush1.bf16.msra.mxu0 0
    %376 = vmatprep.mubr.bf16.mxu0 0
    %377 = vmatmul.mubr.bf16.gmra.mrb[0].mxu0 %v334
    %v378 = vpop.f32.mrb[0].mxu0
    %v379 = vadd.f32 %v283, %v378
    %v380 = vpop.f32.mrb[0].mxu0
    %v381 = vpop.f32.mrb[0].mxu0
    %v382 = vadd.f32 %v286, %v381
    %v383 = vpop.f32.mrb[0].mxu0
    %384 = vmatprep.mubr.bf16.mxu0 0
    %385 = vmatmul.mubr.bf16.gmra.mrb[0].mxu0 %v336
    %v386 = vpop.f32.mrb[0].mxu0
    %v387 = vadd.f32 %v291, %v386
    %v388 = vpop.f32.mrb[0].mxu0
    %v389 = vpop.f32.mrb[0].mxu0
    %v390 = vadd.f32 %v294, %v389
    %v391 = vpop.f32.mrb[0].mxu0
    %392 = vmatprep.mubr.bf16.mxu0 0
    %393 = vmatmul.mubr.bf16.gmra.mrb[0].mxu0 %v339
    %v394 = vpop.f32.mrb[0].mxu0
    %v395 = vadd.f32 %v299, %v394
    %v396 = vpop.f32.mrb[0].mxu0
    %v397 = vpop.f32.mrb[0].mxu0
    %v398 = vpop.f32.mrb[0].mxu0
    %399 = vdwg.mxu0
    %v400 = vld [vmem:[#allocation3] sm:$0xe]
    %s401 = scalar_lea.vmem [#allocation6], 72
    %v402 = vld [vmem:[%s401] sm:$0xf]
    %v403 = vld [vmem:[%s401 + $0x4] sm:$0xf]
    %v404 = vld [vmem:[%s401 + $0x8] sm:$0xf]
    %v405 = vld [vmem:[%s401 + $0xc] sm:$0xf]
    %v406 = vld [vmem:[%s401 + $0x10] sm:$0xf]
    %v407 = vld [vmem:[%s401 + $0x14] sm:$0xf]
    %v408 = vld [vmem:[%s401 + $0x18] sm:$0xf]
    %v409 = vld [vmem:[%s401 + $0x1c] sm:$0xf]
    %v410 = vld [vmem:[%s401 + $0x20] sm:$0xf]
    %v412 = vunpack.c.l.b16 %v400
    %v413 = vpack.c.b16 %v176, %v412
    %vm414 = vcmask 1046528
    %v415 = vrot.slane %v413, 1
    %v416 = vrot.slane %v181, 1
    %v417 = vsel %vm414, %v415, %v416
    %v418 = vrot.slane %v182, 1
    %v419 = vsel %vm414, %v416, %v418
    %v429 = vunpack.c.l.b16 %v402
    %v430 = vunpack.c.l.b16 %v403
    %v431 = vunpack.c.l.b16 %v404
    %v432 = vunpack.c.l.b16 %v405
    %v433 = vunpack.c.l.b16 %v406
    %v434 = vunpack.c.l.b16 %v407
    %v435 = vunpack.c.l.b16 %v408
    %v436 = vunpack.c.l.b16 %v409
    %v437 = vunpack.c.l.b16 %v410
    %v438 = vpack.c.b16 %v430, %v429
    %v439 = vpack.c.b16 %v432, %v431
    %v440 = vpack.c.b16 %v434, %v433
    %v441 = vpack.c.b16 %v436, %v435
    %v442 = vpack.c.b16 %v437, %v437
    %v448 = vsel %vm234, %v417, 0
    %v451 = vsel %vm234, %v419, 0
    %v454 = vsel %vm234, %v418, 0
    %v457 = vsel %vm244, %v442, 0
    %459 = vmatprep.subr.bf16.mxu0 0
    %460 = vmatpush1.bf16.msra.mxu0 %v438
    %461 = vmatprep.subr.bf16.mxu0 0
    %462 = vmatpush1.bf16.msra.mxu0 %v439
    %463 = vmatprep.subr.bf16.mxu0 0
    %464 = vmatpush1.bf16.msra.mxu0 %v440
    %465 = vmatprep.subr.bf16.mxu0 0
    %466 = vmatpush1.bf16.msra.mxu0 %v441
    %467 = vmatprep.subr.bf16.mxu0 0
    %468 = vmatpush1.bf16.msra.mxu0 %v457
    %469 = vmatprep.subr.bf16.mxu0 0
    %470 = vmatpush1.bf16.msra.mxu0 0
    %471 = vmatprep.subr.bf16.mxu0 0
    %472 = vmatpush1.bf16.msra.mxu0 0
    %473 = vmatprep.subr.bf16.mxu0 0
    %474 = vmatpush1.bf16.msra.mxu0 0
    %475 = vmatprep.subr.bf16.mxu0 0
    %476 = vmatpush1.bf16.msra.mxu0 0
    %477 = vmatprep.subr.bf16.mxu0 0
    %478 = vmatpush1.bf16.msra.mxu0 0
    %479 = vmatprep.subr.bf16.mxu0 0
    %480 = vmatpush1.bf16.msra.mxu0 0
    %481 = vmatprep.subr.bf16.mxu0 0
    %482 = vmatpush1.bf16.msra.mxu0 0
    %483 = vmatprep.subr.bf16.mxu0 0
    %484 = vmatpush1.bf16.msra.mxu0 0
    %485 = vmatprep.subr.bf16.mxu0 0
    %486 = vmatpush1.bf16.msra.mxu0 0
    %487 = vmatprep.subr.bf16.mxu0 0
    %488 = vmatpush1.bf16.msra.mxu0 0
    %489 = vmatprep.subr.bf16.mxu0 0
    %490 = vmatpush1.bf16.msra.mxu0 0
    %491 = vmatprep.mubr.bf16.mxu0 0
    %492 = vmatmul.mubr.bf16.gmra.mrb[0].mxu0 %v448
    %v493 = vpop.f32.mrb[0].mxu0
    %v494 = vadd.f32 0.0, %v493
    %v495 = vpop.f32.mrb[0].mxu0
    %v496 = vpop.f32.mrb[0].mxu0
    %v497 = vadd.f32 0.0, %v496
    %v498 = vpop.f32.mrb[0].mxu0
    %499 = vmatprep.mubr.bf16.mxu0 0
    %500 = vmatmul.mubr.bf16.gmra.mrb[0].mxu0 %v451
    %v501 = vpop.f32.mrb[0].mxu0
    %v502 = vadd.f32 0.0, %v501
    %v503 = vpop.f32.mrb[0].mxu0
    %v504 = vpop.f32.mrb[0].mxu0
    %v505 = vadd.f32 0.0, %v504
    %v506 = vpop.f32.mrb[0].mxu0
    %507 = vmatprep.mubr.bf16.mxu0 0
    %508 = vmatmul.mubr.bf16.gmra.mrb[0].mxu0 %v454
    %v509 = vpop.f32.mrb[0].mxu0
    %v510 = vadd.f32 0.0, %v509
    %v511 = vpop.f32.mrb[0].mxu0
    %v512 = vpop.f32.mrb[0].mxu0
    %v513 = vpop.f32.mrb[0].mxu0
    %514 = vdwg.mxu0
    %v515 = vadd.f32 %v379, %v494
    %v516 = vadd.f32 %v382, %v497
    %v517 = vadd.f32 %v387, %v502
    %v518 = vadd.f32 %v390, %v505
    %v519 = vadd.f32 %v395, %v510
    %v520 = vmul.f32 %v515, %v135
    %v521 = vmul.f32 %v516, %v136
    %v522 = vmul.f32 %v517, %v137
    %v523 = vmul.f32 %v518, %v138
    %v524 = vmul.f32 %v519, %v139
    %v525 = vsel %vm234, %v520, 0.0
    %v526 = vsel %vm234, %v521, 0.0
    %v527 = vadd.f32 %v525, %v526
    %v528 = vsel %vm234, %v522, 0.0
    %v529 = vadd.f32 %v527, %v528
    %v530 = vsel %vm234, %v523, 0.0
    %v531 = vadd.f32 %v529, %v530
    %vm532 = vcmask 584704
    %v533 = vsel %vm532, %v524, 0.0
    %v534 = vadd.f32 %v531, %v533
    %v535 = vrot.slane %v534, 4
    %v536 = vadd.f32 %v534, %v535
    %v537 = vrot.slane %v536, 2
    %v538 = vadd.f32 %v536, %v537
    %v539 = vrot.slane %v538, 1
    %v540 = vadd.f32 %v538, %v539
    %v541 = vld [vmem:[#allocation9] sm:$0xff]
    %v542 = vld [vmem:[#allocation9 + $0x8] sm:$0xff]
    %v543 = vld [vmem:[#allocation9 + $0x10] sm:$0xff]
    %v544 = vld [vmem:[#allocation9 + $0x18] sm:$0xff]
    %v545 = vld [vmem:[#allocation9 + $0x20] sm:$0xff]
    %v546 = vld [vmem:[#allocation9 + $0x28] sm:$0xff]
    %v547 = vld [vmem:[#allocation9 + $0x30] sm:$0xff]
    %v548 = vld [vmem:[#allocation9 + $0x38] sm:$0xff]
    %v549 = vld [vmem:[#allocation9 + $0x40] sm:$0xff]
    %v551 = vsel %vm234, %v540, 0
    %553 = vmatprep.subr.mxu0 0.0
    %554 = vmatpush1.msra.mxu0 %v541
    %555 = vmatprep.subr.mxu0 0.0
    %556 = vmatpush1.msra.mxu0 %v542
    %557 = vmatprep.subr.mxu0 0.0
    %558 = vmatpush1.msra.mxu0 %v543
    %559 = vmatprep.subr.mxu0 0.0
    %560 = vmatpush1.msra.mxu0 %v544
    %561 = vmatprep.subr.mxu0 0.0
    %562 = vmatpush1.msra.mxu0 %v545
    %563 = vmatprep.subr.mxu0 0.0
    %564 = vmatpush1.msra.mxu0 %v546
    %565 = vmatprep.subr.mxu0 0.0
    %566 = vmatpush1.msra.mxu0 %v547
    %567 = vmatprep.subr.mxu0 0.0
    %568 = vmatpush1.msra.mxu0 %v548
    %569 = vmatprep.subr.mxu0 0.0
    %570 = vmatpush1.msra.mxu0 %v549
    %571 = vmatprep.subr.mxu0 0.0
    %572 = vmatpush1.msra.mxu0 0.0
    %573 = vmatprep.subr.mxu0 0.0
    %574 = vmatpush1.msra.mxu0 0.0
    %575 = vmatprep.subr.mxu0 0.0
    %576 = vmatpush1.msra.mxu0 0.0
    %577 = vmatprep.subr.mxu0 0.0
    %578 = vmatpush1.msra.mxu0 0.0
    %579 = vmatprep.subr.mxu0 0.0
    %580 = vmatpush1.msra.mxu0 0.0
    %581 = vmatprep.subr.mxu0 0.0
    %582 = vmatpush1.msra.mxu0 0.0
    %583 = vmatprep.subr.mxu0 0.0
    %584 = vmatpush1.msra.mxu0 0.0
    %585 = vmatprep.subr.mxu0 0.0
    %586 = vmatpush1.msra.mxu0 0.0
    %587 = vmatprep.subr.mxu0 0.0
    %588 = vmatpush1.msra.mxu0 0.0
    %589 = vmatprep.subr.mxu0 0.0
    %590 = vmatpush1.msra.mxu0 0.0
    %591 = vmatprep.subr.mxu0 0.0
    %592 = vmatpush1.msra.mxu0 0.0
    %593 = vmatprep.subr.mxu0 0.0
    %594 = vmatpush1.msra.mxu0 0.0
    %595 = vmatprep.subr.mxu0 0.0
    %596 = vmatpush1.msra.mxu0 0.0
    %597 = vmatprep.subr.mxu0 0.0
    %598 = vmatpush1.msra.mxu0 0.0
    %599 = vmatprep.subr.mxu0 0.0
    %600 = vmatpush1.msra.mxu0 0.0
    %601 = vmatprep.subr.mxu0 0.0
    %602 = vmatpush1.msra.mxu0 0.0
    %603 = vmatprep.subr.mxu0 0.0
    %604 = vmatpush1.msra.mxu0 0.0
    %605 = vmatprep.subr.mxu0 0.0
    %606 = vmatpush1.msra.mxu0 0.0
    %607 = vmatprep.subr.mxu0 0.0
    %608 = vmatpush1.msra.mxu0 0.0
    %609 = vmatprep.subr.mxu0 0.0
    %610 = vmatpush1.msra.mxu0 0.0
    %611 = vmatprep.subr.mxu0 0.0
    %612 = vmatpush1.msra.mxu0 0.0
    %613 = vmatprep.subr.mxu0 0.0
    %614 = vmatpush1.msra.mxu0 0.0
    %615 = vmatprep.subr.mxu0 0.0
    %616 = vmatpush1.msra.mxu0 0.0
    %617 = vmatprep.mubr.f32.mxu0 0.0
    %618 = vmatmul.mubr.f32.gmra.mrb[0].mxu0 %v551
    %v619 = vpop.f32.mrb[0].mxu0
    %v620 = vadd.f32 0.0, %v619
    %v621 = vpop.f32.mrb[0].mxu0
    %622 = vdwg.mxu0
    %v623 = vmul.f32 %v620, 0.001953125
    %v624 = vmul.f32 %v520, %v520
    %v625 = vmul.f32 %v521, %v521
    %v626 = vmul.f32 %v522, %v522
    %v627 = vmul.f32 %v523, %v523
    %v628 = vmul.f32 %v524, %v524
    %v629 = vsel %vm234, %v624, 0.0
    %v630 = vsel %vm234, %v625, 0.0
    %v631 = vadd.f32 %v629, %v630
    %v632 = vsel %vm234, %v626, 0.0
    %v633 = vadd.f32 %v631, %v632
    %v634 = vsel %vm234, %v627, 0.0
    %v635 = vadd.f32 %v633, %v634
    %v636 = vsel %vm532, %v628, 0.0
    %v637 = vadd.f32 %v635, %v636
    %v638 = vrot.slane %v637, 4
    %v639 = vadd.f32 %v637, %v638
    %v640 = vrot.slane %v639, 2
    %v641 = vadd.f32 %v639, %v640
    %v642 = vrot.slane %v641, 1
    %v643 = vadd.f32 %v641, %v642
    %v645 = vsel %vm234, %v643, 0
    %647 = vmatprep.subr.mxu0 0.0
    %648 = vmatpush1.msra.mxu0 %v541
    %649 = vmatprep.subr.mxu0 0.0
    %650 = vmatpush1.msra.mxu0 %v542
    %651 = vmatprep.subr.mxu0 0.0
    %652 = vmatpush1.msra.mxu0 %v543
    %653 = vmatprep.subr.mxu0 0.0
    %654 = vmatpush1.msra.mxu0 %v544
    %655 = vmatprep.subr.mxu0 0.0
    %656 = vmatpush1.msra.mxu0 %v545
    %657 = vmatprep.subr.mxu0 0.0
    %658 = vmatpush1.msra.mxu0 %v546
    %659 = vmatprep.subr.mxu0 0.0
    %660 = vmatpush1.msra.mxu0 %v547
    %661 = vmatprep.subr.mxu0 0.0
    %662 = vmatpush1.msra.mxu0 %v548
    %663 = vmatprep.subr.mxu0 0.0
    %664 = vmatpush1.msra.mxu0 %v549
    %665 = vmatprep.subr.mxu0 0.0
    %666 = vmatpush1.msra.mxu0 0.0
    %667 = vmatprep.subr.mxu0 0.0
    %668 = vmatpush1.msra.mxu0 0.0
    %669 = vmatprep.subr.mxu0 0.0
    %670 = vmatpush1.msra.mxu0 0.0
    %671 = vmatprep.subr.mxu0 0.0
    %672 = vmatpush1.msra.mxu0 0.0
    %673 = vmatprep.subr.mxu0 0.0
    %674 = vmatpush1.msra.mxu0 0.0
    %675 = vmatprep.subr.mxu0 0.0
    %676 = vmatpush1.msra.mxu0 0.0
    %677 = vmatprep.subr.mxu0 0.0
    %678 = vmatpush1.msra.mxu0 0.0
    %679 = vmatprep.subr.mxu0 0.0
    %680 = vmatpush1.msra.mxu0 0.0
    %681 = vmatprep.subr.mxu0 0.0
    %682 = vmatpush1.msra.mxu0 0.0
    %683 = vmatprep.subr.mxu0 0.0
    %684 = vmatpush1.msra.mxu0 0.0
    %685 = vmatprep.subr.mxu0 0.0
    %686 = vmatpush1.msra.mxu0 0.0
    %687 = vmatprep.subr.mxu0 0.0
    %688 = vmatpush1.msra.mxu0 0.0
    %689 = vmatprep.subr.mxu0 0.0
    %690 = vmatpush1.msra.mxu0 0.0
    %691 = vmatprep.subr.mxu0 0.0
    %692 = vmatpush1.msra.mxu0 0.0
    %693 = vmatprep.subr.mxu0 0.0
    %694 = vmatpush1.msra.mxu0 0.0
    %695 = vmatprep.subr.mxu0 0.0
    %696 = vmatpush1.msra.mxu0 0.0
    %697 = vmatprep.subr.mxu0 0.0
    %698 = vmatpush1.msra.mxu0 0.0
    %699 = vmatprep.subr.mxu0 0.0
    %700 = vmatpush1.msra.mxu0 0.0
    %701 = vmatprep.subr.mxu0 0.0
    %702 = vmatpush1.msra.mxu0 0.0
    %703 = vmatprep.subr.mxu0 0.0
    %704 = vmatpush1.msra.mxu0 0.0
    %705 = vmatprep.subr.mxu0 0.0
    %706 = vmatpush1.msra.mxu0 0.0
    %707 = vmatprep.subr.mxu0 0.0
    %708 = vmatpush1.msra.mxu0 0.0
    %709 = vmatprep.subr.mxu0 0.0
    %710 = vmatpush1.msra.mxu0 0.0
    %711 = vmatprep.mubr.f32.mxu0 0.0
    %712 = vmatmul.mubr.f32.gmra.mrb[0].mxu0 %v645
    %v713 = vpop.f32.mrb[0].mxu0
    %v714 = vadd.f32 0.0, %v713
    %v715 = vpop.f32.mrb[0].mxu0
    %716 = vdwg.mxu0
    %v717 = vmul.f32 %v714, 0.001953125
    %v718 = vld [vmem:[%s5] sm:$0x1]
    %v719 = vmul.f32 %v623, %v623
    %v720 = vsub.f32 %v717, %v719
    %v721 = vadd.f32 %v720, 1e-05
    %v722 = vrsqrt.pop %v721
    %v723 = vmul.f32 %v718, %v722
    %v724 = vld [vmem:[%s6] sm:$0x1]
    %v725 = vmul.f32 %v623, %v723
    %v726 = vsub.f32 %v724, %v725
    %v728 = vlaneseq
    %v729 = vshrl.u32 %v728, 7
    %v730 = vsub.s32 0, %v729
    %v731 = vrot.slane %v723, %v730
    %v733 = vmul.f32 %v520, %v731
    %v734 = vmul.f32 %v521, %v731
    %v735 = vmul.f32 %v522, %v731
    %v736 = vmul.f32 %v523, %v731
    %v737 = vmul.f32 %v524, %v731
    %v739 = vlaneseq
    %v740 = vshrl.u32 %v739, 7
    %v741 = vsub.s32 0, %v740
    %v742 = vrot.slane %v726, %v741
    %v744 = vadd.f32 %v733, %v742
    %v745 = vadd.f32 %v734, %v742
    %v746 = vadd.f32 %v735, %v742
    %v747 = vadd.f32 %v736, %v742
    %v748 = vadd.f32 %v737, %v742
    %v749 = vmax.f32 %v744, 0.0
    %v750 = vmax.f32 %v745, 0.0
    %v751 = vmax.f32 %v746, 0.0
    %v752 = vmax.f32 %v747, 0.0
    %v753 = vmax.f32 %v748, 0.0
    %v754 = vmul.f32 %v749, %v135
    %v755 = vmul.f32 %v750, %v136
    %v756 = vmul.f32 %v751, %v137
    %v757 = vmul.f32 %v752, %v138
    %v758 = vmul.f32 %v753, %v139
    %759 = vst.msk [vmem:[#allocation2] sm:$0xf] %vm532, 0
    %760 = vst.msk [vmem:[#allocation2 + $0x4] sm:$0xf] %vm532, 0
    %vm761 = vcmask 584706
    %762 = vst.msk [vmem:[#allocation2 + $0x18] sm:$0xc] %vm761, 0
    %763 = vst.msk [vmem:[#allocation2 + $0x1c] sm:$0xf] %vm532, 0
    %vm764 = vcmask 582656
    %765 = vst.msk [vmem:[#allocation2 + $0x20] sm:$0x3] %vm764, 0
    %v766 = vpack.c.bf16 %v755, %v754
    %v767 = vpack.c.bf16 %v757, %v756
    %v768 = vpack.c.bf16 %v758, %v758
    %v772 = vunpack.c.l.b16 %v766
    %v773 = vunpack.c.h.b16 %v766
    %v774 = vunpack.c.l.b16 %v767
    %v775 = vunpack.c.h.b16 %v767
    %v776 = vunpack.c.l.b16 %v768
    %v777 = vpack.c.b16 %v772, %v772
    %v778 = vpack.c.b16 %v773, %v773
    %v779 = vpack.c.b16 %v774, %v774
    %v780 = vpack.c.b16 %v775, %v775
    %v781 = vpack.c.b16 %v776, %v776
    %787 = vst.msk [vmem:[#allocation2 + $0x8] sm:$0xf] %vm532, %v777
    %788 = vst.msk [vmem:[#allocation2 + $0xc] sm:$0xf] %vm532, %v778
    %789 = vst.msk [vmem:[#allocation2 + $0x10] sm:$0xf] %vm532, %v779
    %790 = vst.msk [vmem:[#allocation2 + $0x14] sm:$0xf] %vm532, %v780
    %791 = vst.msk [vmem:[#allocation2 + $0x18] sm:$0x3] %vm764, %v781
    %v792 = vld [vmem:[#allocation2 + $0x4] sm:$0x8]
    %v793 = vld [vmem:[#allocation2 + $0x8] sm:$0xf]
    %v794 = vld [vmem:[#allocation2 + $0xc] sm:$0xf]
    %v795 = vld [vmem:[#allocation2 + $0x10] sm:$0xf]
    %v796 = vld [vmem:[#allocation2 + $0x14] sm:$0xf]
    %v797 = vld [vmem:[#allocation2 + $0x18] sm:$0x3]
    %v798 = vld [vmem:[#allocation8] sm:$0xf]
    %v799 = vld [vmem:[#allocation8 + $0x4] sm:$0xf]
    %v800 = vld [vmem:[#allocation8 + $0x8] sm:$0xf]
    %v801 = vld [vmem:[#allocation8 + $0xc] sm:$0xf]
    %v802 = vld [vmem:[#allocation8 + $0x10] sm:$0xf]
    %v803 = vld [vmem:[#allocation8 + $0x14] sm:$0xf]
    %v804 = vld [vmem:[#allocation8 + $0x18] sm:$0xf]
    %v805 = vld [vmem:[#allocation8 + $0x1c] sm:$0xf]
    %v806 = vld [vmem:[#allocation8 + $0x20] sm:$0xf]
    %s807 = scalar_lea.vmem [#allocation8], 36
    %v808 = vld [vmem:[%s807] sm:$0xf]
    %v809 = vld [vmem:[%s807 + $0x4] sm:$0xf]
    %v810 = vld [vmem:[%s807 + $0x8] sm:$0xf]
    %v811 = vld [vmem:[%s807 + $0xc] sm:$0xf]
    %v812 = vld [vmem:[%s807 + $0x10] sm:$0xf]
    %v813 = vld [vmem:[%s807 + $0x14] sm:$0xf]
    %v814 = vld [vmem:[%s807 + $0x18] sm:$0xf]
    %v815 = vld [vmem:[%s807 + $0x1c] sm:$0xf]
    %v816 = vld [vmem:[%s807 + $0x20] sm:$0xf]
    %v822 = vunpack.c.l.b16 %v793
    %v823 = vunpack.c.l.b16 %v794
    %v824 = vunpack.c.l.b16 %v795
    %v825 = vunpack.c.l.b16 %v796
    %v826 = vunpack.c.l.b16 %v797
    %v827 = vpack.c.b16 %v823, %v822
    %v828 = vpack.c.b16 %v825, %v824
    %v829 = vpack.c.b16 %v826, %v826
    %v839 = vunpack.c.l.b16 %v808
    %v840 = vunpack.c.l.b16 %v809
    %v841 = vunpack.c.l.b16 %v810
    %v842 = vunpack.c.l.b16 %v811
    %v843 = vunpack.c.l.b16 %v812
    %v844 = vunpack.c.l.b16 %v813
    %v845 = vunpack.c.l.b16 %v814
    %v846 = vunpack.c.l.b16 %v815
    %v847 = vunpack.c.l.b16 %v816
    %v848 = vpack.c.b16 %v840, %v839
    %v849 = vpack.c.b16 %v842, %v841
    %v850 = vpack.c.b16 %v844, %v843
    %v851 = vpack.c.b16 %v846, %v845
    %v852 = vpack.c.b16 %v847, %v847
    %v858 = vsel %vm234, %v827, 0
    %v861 = vsel %vm234, %v828, 0
    %v864 = vsel %vm234, %v829, 0
    %v867 = vsel %vm244, %v852, 0
    %869 = vmatprep.subr.bf16.mxu0 0
    %870 = vmatpush1.bf16.msra.mxu0 %v848
    %871 = vmatprep.subr.bf16.mxu0 0
    %872 = vmatpush1.bf16.msra.mxu0 %v849
    %873 = vmatprep.subr.bf16.mxu0 0
    %874 = vmatpush1.bf16.msra.mxu0 %v850
    %875 = vmatprep.subr.bf16.mxu0 0
    %876 = vmatpush1.bf16.msra.mxu0 %v851
    %877 = vmatprep.subr.bf16.mxu0 0
    %878 = vmatpush1.bf16.msra.mxu0 %v867
    %879 = vmatprep.subr.bf16.mxu0 0
    %880 = vmatpush1.bf16.msra.mxu0 0
    %881 = vmatprep.subr.bf16.mxu0 0
    %882 = vmatpush1.bf16.msra.mxu0 0
    %883 = vmatprep.subr.bf16.mxu0 0
    %884 = vmatpush1.bf16.msra.mxu0 0
    %885 = vmatprep.subr.bf16.mxu0 0
    %886 = vmatpush1.bf16.msra.mxu0 0
    %887 = vmatprep.subr.bf16.mxu0 0
    %888 = vmatpush1.bf16.msra.mxu0 0
    %889 = vmatprep.subr.bf16.mxu0 0
    %890 = vmatpush1.bf16.msra.mxu0 0
    %891 = vmatprep.subr.bf16.mxu0 0
    %892 = vmatpush1.bf16.msra.mxu0 0
    %893 = vmatprep.subr.bf16.mxu0 0
    %894 = vmatpush1.bf16.msra.mxu0 0
    %895 = vmatprep.subr.bf16.mxu0 0
    %896 = vmatpush1.bf16.msra.mxu0 0
    %897 = vmatprep.subr.bf16.mxu0 0
    %898 = vmatpush1.bf16.msra.mxu0 0
    %899 = vmatprep.subr.bf16.mxu0 0
    %900 = vmatpush1.bf16.msra.mxu0 0
    %901 = vmatprep.mubr.bf16.mxu0 0
    %902 = vmatmul.mubr.bf16.gmra.mrb[0].mxu0 %v858
    %v903 = vpop.f32.mrb[0].mxu0
    %v904 = vadd.f32 0.0, %v903
    %v905 = vpop.f32.mrb[0].mxu0
    %v906 = vpop.f32.mrb[0].mxu0
    %v907 = vadd.f32 0.0, %v906
    %v908 = vpop.f32.mrb[0].mxu0
    %909 = vmatprep.mubr.bf16.mxu0 0
    %910 = vmatmul.mubr.bf16.gmra.mrb[0].mxu0 %v861
    %v911 = vpop.f32.mrb[0].mxu0
    %v912 = vadd.f32 0.0, %v911
    %v913 = vpop.f32.mrb[0].mxu0
    %v914 = vpop.f32.mrb[0].mxu0
    %v915 = vadd.f32 0.0, %v914
    %v916 = vpop.f32.mrb[0].mxu0
    %917 = vmatprep.mubr.bf16.mxu0 0
    %918 = vmatmul.mubr.bf16.gmra.mrb[0].mxu0 %v864
    %v919 = vpop.f32.mrb[0].mxu0
    %v920 = vadd.f32 0.0, %v919
    %v921 = vpop.f32.mrb[0].mxu0
    %v922 = vpop.f32.mrb[0].mxu0
    %v923 = vpop.f32.mrb[0].mxu0
    %924 = vdwg.mxu0
    %v926 = vunpack.c.l.b16 %v792
    %v927 = vpack.c.b16 %v822, %v926
    %v928 = vpack.c.b16 %v824, %v823
    %v929 = vpack.c.b16 %v826, %v825
    %vm930 = vsmask.f32 4352
    %v932 = vshrl.u32 %v927, 16
    %v934 = vrot.slane %v932, 3
    %v935 = vshll.u32 %v927, 16
    %v937 = vrot.slane %v935, 4
    %v938 = vor.u32 %v934, %v937
    %v940 = vshrl.u32 %v928, 16
    %v942 = vrot.slane %v940, 3
    %v943 = vshll.u32 %v928, 16
    %v945 = vrot.slane %v943, 4
    %v946 = vor.u32 %v942, %v945
    %v947 = vsel %vm930, %v938, %v946
    %v949 = vshrl.u32 %v929, 16
    %v951 = vrot.slane %v949, 3
    %v952 = vshll.u32 %v929, 16
    %v954 = vrot.slane %v952, 4
    %v955 = vor.u32 %v951, %v954
    %v956 = vsel %vm930, %v946, %v955
    %v966 = vunpack.c.l.b16 %v798
    %v967 = vunpack.c.l.b16 %v799
    %v968 = vunpack.c.l.b16 %v800
    %v969 = vunpack.c.l.b16 %v801
    %v970 = vunpack.c.l.b16 %v802
    %v971 = vunpack.c.l.b16 %v803
    %v972 = vunpack.c.l.b16 %v804
    %v973 = vunpack.c.l.b16 %v805
    %v974 = vunpack.c.l.b16 %v806
    %v975 = vpack.c.b16 %v967, %v966
    %v976 = vpack.c.b16 %v969, %v968
    %v977 = vpack.c.b16 %v971, %v970
    %v978 = vpack.c.b16 %v973, %v972
    %v979 = vpack.c.b16 %v974, %v974
    %v985 = vsel %vm234, %v947, 0
    %v988 = vsel %vm234, %v956, 0
    %v991 = vsel %vm234, %v955, 0
    %v994 = vsel %vm244, %v979, 0
    %996 = vmatprep.subr.bf16.mxu0 0
    %997 = vmatpush1.bf16.msra.mxu0 %v975
    %998 = vmatprep.subr.bf16.mxu0 0
    %999 = vmatpush1.bf16.msra.mxu0 %v976
    %1000 = vmatprep.subr.bf16.mxu0 0
    %1001 = vmatpush1.bf16.msra.mxu0 %v977
    %1002 = vmatprep.subr.bf16.mxu0 0
    %1003 = vmatpush1.bf16.msra.mxu0 %v978
    %1004 = vmatprep.subr.bf16.mxu0 0
    %1005 = vmatpush1.bf16.msra.mxu0 %v994
    %1006 = vmatprep.subr.bf16.mxu0 0
    %1007 = vmatpush1.bf16.msra.mxu0 0
    %1008 = vmatprep.subr.bf16.mxu0 0
    %1009 = vmatpush1.bf16.msra.mxu0 0
    %1010 = vmatprep.subr.bf16.mxu0 0
    %1011 = vmatpush1.bf16.msra.mxu0 0
    %1012 = vmatprep.subr.bf16.mxu0 0
    %1013 = vmatpush1.bf16.msra.mxu0 0
    %1014 = vmatprep.subr.bf16.mxu0 0
    %1015 = vmatpush1.bf16.msra.mxu0 0
    %1016 = vmatprep.subr.bf16.mxu0 0
    %1017 = vmatpush1.bf16.msra.mxu0 0
    %1018 = vmatprep.subr.bf16.mxu0 0
    %1019 = vmatpush1.bf16.msra.mxu0 0
    %1020 = vmatprep.subr.bf16.mxu0 0
    %1021 = vmatpush1.bf16.msra.mxu0 0
    %1022 = vmatprep.subr.bf16.mxu0 0
    %1023 = vmatpush1.bf16.msra.mxu0 0
    %1024 = vmatprep.subr.bf16.mxu0 0
    %1025 = vmatpush1.bf16.msra.mxu0 0
    %1026 = vmatprep.subr.bf16.mxu0 0
    %1027 = vmatpush1.bf16.msra.mxu0 0
    %1028 = vmatprep.mubr.bf16.mxu0 0
    %1029 = vmatmul.mubr.bf16.gmra.mrb[0].mxu0 %v985
    %v1030 = vpop.f32.mrb[0].mxu0
    %v1031 = vadd.f32 %v904, %v1030
    %v1032 = vpop.f32.mrb[0].mxu0
    %v1033 = vpop.f32.mrb[0].mxu0
    %v1034 = vadd.f32 %v907, %v1033
    %v1035 = vpop.f32.mrb[0].mxu0
    %1036 = vmatprep.mubr.bf16.mxu0 0
    %1037 = vmatmul.mubr.bf16.gmra.mrb[0].mxu0 %v988
    %v1038 = vpop.f32.mrb[0].mxu0
    %v1039 = vadd.f32 %v912, %v1038
    %v1040 = vpop.f32.mrb[0].mxu0
    %v1041 = vpop.f32.mrb[0].mxu0
    %v1042 = vadd.f32 %v915, %v1041
    %v1043 = vpop.f32.mrb[0].mxu0
    %1044 = vmatprep.mubr.bf16.mxu0 0
    %1045 = vmatmul.mubr.bf16.gmra.mrb[0].mxu0 %v991
    %v1046 = vpop.f32.mrb[0].mxu0
    %v1047 = vadd.f32 %v920, %v1046
    %v1048 = vpop.f32.mrb[0].mxu0
    %v1049 = vpop.f32.mrb[0].mxu0
    %v1050 = vpop.f32.mrb[0].mxu0
    %1051 = vdwg.mxu0
    %v1052 = vld [vmem:[#allocation2 + $0x18] sm:$0x7]
    %s1053 = scalar_lea.vmem [#allocation8], 72
    %v1054 = vld [vmem:[%s1053] sm:$0xf]
    %v1055 = vld [vmem:[%s1053 + $0x4] sm:$0xf]
    %v1056 = vld [vmem:[%s1053 + $0x8] sm:$0xf]
    %v1057 = vld [vmem:[%s1053 + $0xc] sm:$0xf]
    %v1058 = vld [vmem:[%s1053 + $0x10] sm:$0xf]
    %v1059 = vld [vmem:[%s1053 + $0x14] sm:$0xf]
    %v1060 = vld [vmem:[%s1053 + $0x18] sm:$0xf]
    %v1061 = vld [vmem:[%s1053 + $0x1c] sm:$0xf]
    %v1062 = vld [vmem:[%s1053 + $0x20] sm:$0xf]
    %v1064 = vunpack.c.l.b16 %v1052
    %v1065 = vpack.c.b16 %v1064, %v1064
    %v1066 = vshrl.u32 %v827, 16
    %v1068 = vshll.u32 %v827, 16
    %v1070 = vrot.slane %v1068, 1
    %v1071 = vor.u32 %v1066, %v1070
    %v1072 = vshll.u32 %v828, 16
    %v1074 = vrot.slane %v1072, 1
    %v1075 = vsel %vm183, %v1071, %v1074
    %v1076 = vshrl.u32 %v828, 16
    %v1078 = vor.u32 %v1076, %v1074
    %v1080 = vshll.u32 %v1065, 16
    %v1082 = vrot.slane %v1080, 1
    %v1083 = vsel %vm183, %v1078, %v1082
    %v1084 = vshrl.u32 %v1065, 16
    %v1086 = vor.u32 %v1084, %v1082
    %v1096 = vunpack.c.l.b16 %v1054
    %v1097 = vunpack.c.l.b16 %v1055
    %v1098 = vunpack.c.l.b16 %v1056
    %v1099 = vunpack.c.l.b16 %v1057
    %v1100 = vunpack.c.l.b16 %v1058
    %v1101 = vunpack.c.l.b16 %v1059
    %v1102 = vunpack.c.l.b16 %v1060
    %v1103 = vunpack.c.l.b16 %v1061
    %v1104 = vunpack.c.l.b16 %v1062
    %v1105 = vpack.c.b16 %v1097, %v1096
    %v1106 = vpack.c.b16 %v1099, %v1098
    %v1107 = vpack.c.b16 %v1101, %v1100
    %v1108 = vpack.c.b16 %v1103, %v1102
    %v1109 = vpack.c.b16 %v1104, %v1104
    %v1115 = vsel %vm234, %v1075, 0
    %v1118 = vsel %vm234, %v1083, 0
    %v1121 = vsel %vm234, %v1086, 0
    %v1124 = vsel %vm244, %v1109, 0
    %1126 = vmatprep.subr.bf16.mxu0 0
    %1127 = vmatpush1.bf16.msra.mxu0 %v1105
    %1128 = vmatprep.subr.bf16.mxu0 0
    %1129 = vmatpush1.bf16.msra.mxu0 %v1106
    %1130 = vmatprep.subr.bf16.mxu0 0
    %1131 = vmatpush1.bf16.msra.mxu0 %v1107
    %1132 = vmatprep.subr.bf16.mxu0 0
    %1133 = vmatpush1.bf16.msra.mxu0 %v1108
    %1134 = vmatprep.subr.bf16.mxu0 0
    %1135 = vmatpush1.bf16.msra.mxu0 %v1124
    %1136 = vmatprep.subr.bf16.mxu0 0
    %1137 = vmatpush1.bf16.msra.mxu0 0
    %1138 = vmatprep.subr.bf16.mxu0 0
    %1139 = vmatpush1.bf16.msra.mxu0 0
    %1140 = vmatprep.subr.bf16.mxu0 0
    %1141 = vmatpush1.bf16.msra.mxu0 0
    %1142 = vmatprep.subr.bf16.mxu0 0
    %1143 = vmatpush1.bf16.msra.mxu0 0
    %1144 = vmatprep.subr.bf16.mxu0 0
    %1145 = vmatpush1.bf16.msra.mxu0 0
    %1146 = vmatprep.subr.bf16.mxu0 0
    %1147 = vmatpush1.bf16.msra.mxu0 0
    %1148 = vmatprep.subr.bf16.mxu0 0
    %1149 = vmatpush1.bf16.msra.mxu0 0
    %1150 = vmatprep.subr.bf16.mxu0 0
    %1151 = vmatpush1.bf16.msra.mxu0 0
    %1152 = vmatprep.subr.bf16.mxu0 0
    %1153 = vmatpush1.bf16.msra.mxu0 0
    %1154 = vmatprep.subr.bf16.mxu0 0
    %1155 = vmatpush1.bf16.msra.mxu0 0
    %1156 = vmatprep.subr.bf16.mxu0 0
    %1157 = vmatpush1.bf16.msra.mxu0 0
    %1158 = vmatprep.mubr.bf16.mxu0 0
    %1159 = vmatmul.mubr.bf16.gmra.mrb[0].mxu0 %v1115
    %v1160 = vpop.f32.mrb[0].mxu0
    %v1161 = vadd.f32 0.0, %v1160
    %v1162 = vpop.f32.mrb[0].mxu0
    %v1163 = vpop.f32.mrb[0].mxu0
    %v1164 = vadd.f32 0.0, %v1163
    %v1165 = vpop.f32.mrb[0].mxu0
    %1166 = vmatprep.mubr.bf16.mxu0 0
    %1167 = vmatmul.mubr.bf16.gmra.mrb[0].mxu0 %v1118
    %v1168 = vpop.f32.mrb[0].mxu0
    %v1169 = vadd.f32 0.0, %v1168
    %v1170 = vpop.f32.mrb[0].mxu0
    %v1171 = vpop.f32.mrb[0].mxu0
    %v1172 = vadd.f32 0.0, %v1171
    %v1173 = vpop.f32.mrb[0].mxu0
    %1174 = vmatprep.mubr.bf16.mxu0 0
    %1175 = vmatmul.mubr.bf16.gmra.mrb[0].mxu0 %v1121
    %v1176 = vpop.f32.mrb[0].mxu0
    %v1177 = vadd.f32 0.0, %v1176
    %v1178 = vpop.f32.mrb[0].mxu0
    %v1179 = vpop.f32.mrb[0].mxu0
    %v1180 = vpop.f32.mrb[0].mxu0
    %1181 = vdwg.mxu0
    %v1182 = vadd.f32 %v1031, %v1161
    %v1183 = vadd.f32 %v1034, %v1164
    %v1184 = vadd.f32 %v1039, %v1169
    %v1185 = vadd.f32 %v1042, %v1172
    %v1186 = vadd.f32 %v1047, %v1177
    %v1187 = vmul.f32 %v1182, %v140
    %v1188 = vmul.f32 %v1183, %v141
    %v1189 = vmul.f32 %v1184, %v142
    %v1190 = vmul.f32 %v1185, %v143
    %v1191 = vmul.f32 %v1186, %v144
    %v1192 = vadd.f32 %v1187, %v1188
    %v1193 = vadd.f32 %v1192, %v1189
    %v1194 = vadd.f32 %v1193, %v1190
    %v1195 = vsel %vm244, %v1191, 0.0
    %v1196 = vadd.f32 %v1194, %v1195
    %v1197 = vrot.slane %v1196, 4
    %v1198 = vadd.f32 %v1196, %v1197
    %v1199 = vrot.slane %v1198, 2
    %v1200 = vadd.f32 %v1198, %v1199
    %v1201 = vrot.slane %v1200, 1
    %v1202 = vadd.f32 %v1200, %v1201
    %v1203 = vld [vmem:[#allocation11] sm:$0xff]
    %v1204 = vld [vmem:[#allocation11 + $0x8] sm:$0xff]
    %v1205 = vld [vmem:[#allocation11 + $0x10] sm:$0xff]
    %v1206 = vld [vmem:[#allocation11 + $0x18] sm:$0xff]
    %v1207 = vld [vmem:[#allocation11 + $0x20] sm:$0xff]
    %v1208 = vld [vmem:[#allocation11 + $0x28] sm:$0xff]
    %v1209 = vld [vmem:[#allocation11 + $0x30] sm:$0xff]
    %v1210 = vld [vmem:[#allocation11 + $0x38] sm:$0xff]
    %v1211 = vld [vmem:[#allocation11 + $0x40] sm:$0xff]
    %v1212 = vld [vmem:[#allocation11 + $0x48] sm:$0xff]
    %v1213 = vld [vmem:[#allocation11 + $0x50] sm:$0xff]
    %v1214 = vld [vmem:[#allocation11 + $0x58] sm:$0xff]
    %v1215 = vld [vmem:[#allocation11 + $0x60] sm:$0xff]
    %v1216 = vld [vmem:[#allocation11 + $0x68] sm:$0xff]
    %v1217 = vld [vmem:[#allocation11 + $0x70] sm:$0xff]
    %v1218 = vld [vmem:[#allocation11 + $0x78] sm:$0xff]
    %1219 = vmatprep.subr.mxu0 0.0
    %1220 = vmatpush1.msra.mxu0 %v1203
    %1221 = vmatprep.subr.mxu0 0.0
    %1222 = vmatpush1.msra.mxu0 %v1204
    %1223 = vmatprep.subr.mxu0 0.0
    %1224 = vmatpush1.msra.mxu0 %v1205
    %1225 = vmatprep.subr.mxu0 0.0
    %1226 = vmatpush1.msra.mxu0 %v1206
    %1227 = vmatprep.subr.mxu0 0.0
    %1228 = vmatpush1.msra.mxu0 %v1207
    %1229 = vmatprep.subr.mxu0 0.0
    %1230 = vmatpush1.msra.mxu0 %v1208
    %1231 = vmatprep.subr.mxu0 0.0
    %1232 = vmatpush1.msra.mxu0 %v1209
    %1233 = vmatprep.subr.mxu0 0.0
    %1234 = vmatpush1.msra.mxu0 %v1210
    %1235 = vmatprep.subr.mxu0 0.0
    %1236 = vmatpush1.msra.mxu0 %v1211
    %1237 = vmatprep.subr.mxu0 0.0
    %1238 = vmatpush1.msra.mxu0 %v1212
    %1239 = vmatprep.subr.mxu0 0.0
    %1240 = vmatpush1.msra.mxu0 %v1213
    %1241 = vmatprep.subr.mxu0 0.0
    %1242 = vmatpush1.msra.mxu0 %v1214
    %1243 = vmatprep.subr.mxu0 0.0
    %1244 = vmatpush1.msra.mxu0 %v1215
    %1245 = vmatprep.subr.mxu0 0.0
    %1246 = vmatpush1.msra.mxu0 %v1216
    %1247 = vmatprep.subr.mxu0 0.0
    %1248 = vmatpush1.msra.mxu0 %v1217
    %1249 = vmatprep.subr.mxu0 0.0
    %1250 = vmatpush1.msra.mxu0 %v1218
    %1251 = vmatprep.subr.mxu0 0.0
    %1252 = vmatpush1.msra.mxu0 0.0
    %1253 = vmatprep.subr.mxu0 0.0
    %1254 = vmatpush1.msra.mxu0 0.0
    %1255 = vmatprep.subr.mxu0 0.0
    %1256 = vmatpush1.msra.mxu0 0.0
    %1257 = vmatprep.subr.mxu0 0.0
    %1258 = vmatpush1.msra.mxu0 0.0
    %1259 = vmatprep.subr.mxu0 0.0
    %1260 = vmatpush1.msra.mxu0 0.0
    %1261 = vmatprep.subr.mxu0 0.0
    %1262 = vmatpush1.msra.mxu0 0.0
    %1263 = vmatprep.subr.mxu0 0.0
    %1264 = vmatpush1.msra.mxu0 0.0
    %1265 = vmatprep.subr.mxu0 0.0
    %1266 = vmatpush1.msra.mxu0 0.0
    %1267 = vmatprep.subr.mxu0 0.0
    %1268 = vmatpush1.msra.mxu0 0.0
    %1269 = vmatprep.subr.mxu0 0.0
    %1270 = vmatpush1.msra.mxu0 0.0
    %1271 = vmatprep.subr.mxu0 0.0
    %1272 = vmatpush1.msra.mxu0 0.0
    %1273 = vmatprep.subr.mxu0 0.0
    %1274 = vmatpush1.msra.mxu0 0.0
    %1275 = vmatprep.subr.mxu0 0.0
    %1276 = vmatpush1.msra.mxu0 0.0
    %1277 = vmatprep.subr.mxu0 0.0
    %1278 = vmatpush1.msra.mxu0 0.0
    %1279 = vmatprep.subr.mxu0 0.0
    %1280 = vmatpush1.msra.mxu0 0.0
    %1281 = vmatprep.subr.mxu0 0.0
    %1282 = vmatpush1.msra.mxu0 0.0
    %1283 = vmatprep.mubr.f32.mxu0 0.0
    %1284 = vmatmul.mubr.f32.gmra.mrb[0].mxu0 %v1202
    %v1285 = vpop.f32.mrb[0].mxu0
    %v1286 = vadd.f32 0.0, %v1285
    %v1287 = vpop.f32.mrb[0].mxu0
    %1288 = vdwg.mxu0
    %v1289 = vmul.f32 %v1286, 0.001953125
    %v1290 = vmul.f32 %v1187, %v1187
    %v1291 = vmul.f32 %v1188, %v1188
    %v1292 = vmul.f32 %v1189, %v1189
    %v1293 = vmul.f32 %v1190, %v1190
    %v1294 = vmul.f32 %v1191, %v1191
    %v1295 = vadd.f32 %v1290, %v1291
    %v1296 = vadd.f32 %v1295, %v1292
    %v1297 = vadd.f32 %v1296, %v1293
    %v1298 = vsel %vm244, %v1294, 0.0
    %v1299 = vadd.f32 %v1297, %v1298
    %v1300 = vrot.slane %v1299, 4
    %v1301 = vadd.f32 %v1299, %v1300
    %v1302 = vrot.slane %v1301, 2
    %v1303 = vadd.f32 %v1301, %v1302
    %v1304 = vrot.slane %v1303, 1
    %v1305 = vadd.f32 %v1303, %v1304
    %1306 = vmatprep.subr.mxu0 0.0
    %1307 = vmatpush1.msra.mxu0 %v1203
    %1308 = vmatprep.subr.mxu0 0.0
    %1309 = vmatpush1.msra.mxu0 %v1204
    %1310 = vmatprep.subr.mxu0 0.0
    %1311 = vmatpush1.msra.mxu0 %v1205
    %1312 = vmatprep.subr.mxu0 0.0
    %1313 = vmatpush1.msra.mxu0 %v1206
    %1314 = vmatprep.subr.mxu0 0.0
    %1315 = vmatpush1.msra.mxu0 %v1207
    %1316 = vmatprep.subr.mxu0 0.0
    %1317 = vmatpush1.msra.mxu0 %v1208
    %1318 = vmatprep.subr.mxu0 0.0
    %1319 = vmatpush1.msra.mxu0 %v1209
    %1320 = vmatprep.subr.mxu0 0.0
    %1321 = vmatpush1.msra.mxu0 %v1210
    %1322 = vmatprep.subr.mxu0 0.0
    %1323 = vmatpush1.msra.mxu0 %v1211
    %1324 = vmatprep.subr.mxu0 0.0
    %1325 = vmatpush1.msra.mxu0 %v1212
    %1326 = vmatprep.subr.mxu0 0.0
    %1327 = vmatpush1.msra.mxu0 %v1213
    %1328 = vmatprep.subr.mxu0 0.0
    %1329 = vmatpush1.msra.mxu0 %v1214
    %1330 = vmatprep.subr.mxu0 0.0
    %1331 = vmatpush1.msra.mxu0 %v1215
    %1332 = vmatprep.subr.mxu0 0.0
    %1333 = vmatpush1.msra.mxu0 %v1216
    %1334 = vmatprep.subr.mxu0 0.0
    %1335 = vmatpush1.msra.mxu0 %v1217
    %1336 = vmatprep.subr.mxu0 0.0
    %1337 = vmatpush1.msra.mxu0 %v1218
    %1338 = vmatprep.subr.mxu0 0.0
    %1339 = vmatpush1.msra.mxu0 0.0
    %1340 = vmatprep.subr.mxu0 0.0
    %1341 = vmatpush1.msra.mxu0 0.0
    %1342 = vmatprep.subr.mxu0 0.0
    %1343 = vmatpush1.msra.mxu0 0.0
    %1344 = vmatprep.subr.mxu0 0.0
    %1345 = vmatpush1.msra.mxu0 0.0
    %1346 = vmatprep.subr.mxu0 0.0
    %1347 = vmatpush1.msra.mxu0 0.0
    %1348 = vmatprep.subr.mxu0 0.0
    %1349 = vmatpush1.msra.mxu0 0.0
    %1350 = vmatprep.subr.mxu0 0.0
    %1351 = vmatpush1.msra.mxu0 0.0
    %1352 = vmatprep.subr.mxu0 0.0
    %1353 = vmatpush1.msra.mxu0 0.0
    %1354 = vmatprep.subr.mxu0 0.0
    %1355 = vmatpush1.msra.mxu0 0.0
    %1356 = vmatprep.subr.mxu0 0.0
    %1357 = vmatpush1.msra.mxu0 0.0
    %1358 = vmatprep.subr.mxu0 0.0
    %1359 = vmatpush1.msra.mxu0 0.0
    %1360 = vmatprep.subr.mxu0 0.0
    %1361 = vmatpush1.msra.mxu0 0.0
    %1362 = vmatprep.subr.mxu0 0.0
    %1363 = vmatpush1.msra.mxu0 0.0
    %1364 = vmatprep.subr.mxu0 0.0
    %1365 = vmatpush1.msra.mxu0 0.0
    %1366 = vmatprep.subr.mxu0 0.0
    %1367 = vmatpush1.msra.mxu0 0.0
    %1368 = vmatprep.subr.mxu0 0.0
    %1369 = vmatpush1.msra.mxu0 0.0
    %1370 = vmatprep.mubr.f32.mxu0 0.0
    %1371 = vmatmul.mubr.f32.gmra.mrb[0].mxu0 %v1305
    %v1372 = vpop.f32.mrb[0].mxu0
    %v1373 = vadd.f32 0.0, %v1372
    %v1374 = vpop.f32.mrb[0].mxu0
    %1375 = vdwg.mxu0
    %v1376 = vmul.f32 %v1373, 0.001953125
    %v1377 = vld [vmem:[%s7] sm:$0x1]
    %v1378 = vmul.f32 %v1289, %v1289
    %v1379 = vsub.f32 %v1376, %v1378
    %v1380 = vadd.f32 %v1379, 1e-05
    %v1381 = vrsqrt.pop %v1380
    %v1382 = vmul.f32 %v1377, %v1381
    %v1383 = vld [vmem:[%s8] sm:$0x1]
    %v1384 = vmul.f32 %v1289, %v1382
    %v1385 = vsub.f32 %v1383, %v1384
    %v1387 = vlaneseq
    %v1388 = vshrl.u32 %v1387, 7
    %v1389 = vsub.s32 0, %v1388
    %v1390 = vrot.slane %v1382, %v1389
    %v1392 = vmul.f32 %v1187, %v1390
    %v1393 = vmul.f32 %v1188, %v1390
    %v1394 = vmul.f32 %v1189, %v1390
    %v1395 = vmul.f32 %v1190, %v1390
    %v1396 = vmul.f32 %v1191, %v1390
    %v1398 = vlaneseq
    %v1399 = vshrl.u32 %v1398, 7
    %v1400 = vsub.s32 0, %v1399
    %v1401 = vrot.slane %v1385, %v1400
    %v1403 = vadd.f32 %v1392, %v1401
    %v1404 = vadd.f32 %v1393, %v1401
    %v1405 = vadd.f32 %v1394, %v1401
    %v1406 = vadd.f32 %v1395, %v1401
    %v1407 = vadd.f32 %v1396, %v1401
    %v1408 = vmax.f32 %v1403, 0.0
    %v1409 = vmax.f32 %v1404, 0.0
    %v1410 = vmax.f32 %v1405, 0.0
    %v1411 = vmax.f32 %v1406, 0.0
    %v1412 = vmax.f32 %v1407, 0.0
    %1413 = vst [vmem:[#allocation15] sm:$0xff] %v1408
    %1414 = vst [vmem:[#allocation15 + $0x8] sm:$0xff] %v1409
    %1415 = vst [vmem:[#allocation15 + $0x10] sm:$0xff] %v1410
    %1416 = vst [vmem:[#allocation15 + $0x18] sm:$0xff] %v1411
    %1417 = vst [vmem:[#allocation15 + $0x20] sm:$0xf] %v1412
    // Predicated region
    $region74: #{tpu_custom_call.1} parent=1 // pred_check
      _
    $region75: #{tpu_custom_call.1} parent=1 // pred_check_branch
      %1419 = sbr.rel (0) target = $region77
    $region76: #{tpu_custom_call.1} parent=1 // pred_region
      %s1421 = ssub.s32 640, 640
      %1422 = vsyncadd [#allocation5], %s1421
      %s1423 = sshll.u32 [#allocation15], 4
      %s1424 = int_to_ptr.vmem [resolvable:$true] %s1423
      %1429 = dma.vmem_to_hbm [thread:$0]  %s1424, 640, %s11, [#allocation5], 128, 128, 8
    $region77: #{tpu_custom_call.1} parent=1 // pred_fallthru
      _
    // Predicated region
    $region78: #{tpu_custom_call.1} parent=1 // pred_check
      _
    $region79: #{tpu_custom_call.1} parent=1 // pred_check_branch
      %1431 = sbr.rel (0) target = $region81
    $region80: #{tpu_custom_call.1} parent=1 // pred_region
      %1432 = dma.done [#allocation5], 640
    $region81: #{tpu_custom_call.1} parent=1 // pred_fallthru
      _
    %1433 = vsyncpa [#allocation4], 1
    %1434 = vsyncpa [#allocation7], 1
    %1435 = vsyncpa [#allocation10], 1
    %1436 = vsyncpa [#allocation13], 1
    %1437 = vsyncpa [#allocation5], 1

</llo_original>
